<compile_context>
chip_gen: v7x
topology: tpu7x:2x2x1
jax: 0.10.0
libtpu: 0.0.40
codegen_flags: <defaults>
</compile_context>

<pallas_src>
import functools

import jax
import jax.numpy as jnp
from jax.experimental import pallas as pl
from jax.experimental.pallas import tpu as pltpu


def _round_up(a, b):
    return (a + b - 1) // b * b


# Centre tap (ky=1, kx=1) first so the 1x1 residual slice starts at row 0.
_TAP_ORDER = ((1, 1), (0, 0), (0, 1), (0, 2), (1, 0), (1, 2), (2, 0), (2, 1), (2, 2))


def bottleneck_kernel(patches_ref, w1_ref, wde_ref, pcb_ref, out_ref,
                      s1_ref, s2_ref, *, cin, p_count):
    """Grid = (c_block, phase, p_tile); phase 0 = stats, phase 1 = normalize.

    patches_ref: (4, 9*Cin, tpp)  quadrant-major im2col tile (centre tap first)
    w1_ref:      (c_blk, 9*Cin)   3x3 conv weights (row block of channels)
    wde_ref:     (c_blk, Cin)     1x1 residual conv weights
    pcb_ref:     (c_blk, 3)       packed per-channel params [gamma, beta, bde]
    out_ref:     (c_blk, tpp)     pooled output tile
    s1/s2_ref:   (c_blk, 1)       per-channel sum / sum-of-squares accumulators
    """
    phase = pl.program_id(1)
    pt = pl.program_id(2)
    w1 = w1_ref[...]

    # Reset the per-channel accumulators at the start of each channel block.
    @pl.when(jnp.logical_and(phase == 0, pt == 0))
    def _init():
        s1_ref[...] = jnp.zeros_like(s1_ref)
        s2_ref[...] = jnp.zeros_like(s2_ref)

    # ---- phase 0: accumulate sum(y) and sum(y*y) of the conv output --------
    # (one reduction sweep; b1 omitted since BN's mean subtraction cancels any
    #  per-channel bias; zero-padded pixel columns thus contribute exactly 0.)
    @pl.when(phase == 0)
    def _stats():
        s1 = jnp.zeros(s1_ref.shape, jnp.float32)
        s2 = jnp.zeros(s2_ref.shape, jnp.float32)
        for q in range(4):                               # 4 pooling quadrants
            y = jnp.dot(w1, patches_ref[q], preferred_element_type=jnp.float32)
            s1 = s1 + jnp.sum(y, axis=1, keepdims=True)
            s2 = s2 + jnp.sum(y * y, axis=1, keepdims=True)
        s1_ref[...] += s1
        s2_ref[...] += s2

    # ---- phase 1: BN (folded scale/bias) + 1x1 residual + ReLU + MaxPool ----
    @pl.when(phase == 1)
    def _normalize():
        inv_n = 1.0 / p_count
        mean = s1_ref[...] * inv_n
        # E[y^2] - mean^2, clamped >= 0 against f32 cancellation (per-channel).
        var = jnp.maximum(s2_ref[...] * inv_n - mean * mean, 0.0)
        scale = pcb_ref[:, 0:1] * jax.lax.rsqrt(var + 1e-5)        # gamma
        bias = pcb_ref[:, 1:2] - mean * scale + pcb_ref[:, 2:3]    # beta + bde
        wde = wde_ref[...]
        acc = None
        for q in range(4):
            pq = patches_ref[q]                                    # (9Cin, tpp)
            y = jnp.dot(w1, pq, preferred_element_type=jnp.float32)
            # 1x1 residual reuses the centre-tap rows [0, Cin) of the patches.
            de = jnp.dot(wde, pq[:cin, :], preferred_element_type=jnp.float32)
            z = jnp.maximum(y * scale + de + bias, 0.0)            # BN+add+ReLU
            acc = z if acc is None else jnp.maximum(acc, z)        # MaxPool2d(2)
        out_ref[...] = acc


@functools.partial(jax.jit, static_argnames=("use_bf16_mxu", "c_blk", "tpp"))
def bottleneck_forward(x_nchw, params, use_bf16_mxu=True, c_blk=None, tpp=None):
    """Bottleneck forward.  Input/output are NCHW, like the PyTorch module."""
    x = x_nchw.astype(jnp.float32)
    N, Cin, H, W = x.shape
    Cout = params["w1"].shape[0]
    assert H % 2 == 0 and W % 2 == 0, "MaxPool2d(2): even H, W assumed"
    Hh, Wh = H // 2, W // 2
    Pp = N * Hh * Wh                    # pooled pixels (lane axis of the output)
    p_count = float(N * H * W)          # BN divisor: real (unpadded) pixel count

    # Pixel-tile size: multiple of 128 lanes (lane-dense loads/stores).
    if tpp is None:
        tpp = min(512, _round_up(Pp, 128))
    assert tpp % 128 == 0
    Pp_pad = _round_up(Pp, tpp)
    n_pt = Pp_pad // tpp

    # Channel block: BN stats are per-channel, so channel blocks are independent
    # ("parallel" axis -> megacore / v7x's two TensorCores).
    # TODO(synk): choose per generation (256 on v6e when Cout>=256, force >=2
    # blocks on v7x) once pltpu.get_tpu_info is plumbed through here.
    if c_blk is None:
        c_blk = min(Cout, 128)
        if Cout % c_blk != 0:
            c_blk = Cout
    assert Cout % c_blk == 0 and c_blk % 8 == 0, "Cout must be a multiple of 8"

    # -- im2col: quadrant-major, pooled-pixel-minor, centre tap first ---------
    # patches[q, k*Cin+c, n*Hh*Wh+hh*Wh+ww] = xpad[n, c, 2hh+dy+ky-1+1, ...],
    # q = dy*2+dx, (ky,kx) = _TAP_ORDER[k].
    # TODO(synk): for v5e, move im2col into the kernel (shifted pl.ds reads of
    # the padded input) to avoid writing+reading the 9x-expanded matrix in HBM.
    xpad = jnp.pad(x, ((0, 0), (0, 0), (1, 1), (1, 1)))
    taps = [xpad[:, :, ky:ky + H, kx:kx + W] for ky, kx in _TAP_ORDER]
    t = jnp.stack(taps, axis=0)                      # (9, N, Cin, H, W)
    t = t.reshape(9, N, Cin, Hh, 2, Wh, 2)           # h = 2hh+dy, w = 2ww+dx
    t = jnp.transpose(t, (4, 6, 0, 2, 1, 3, 5))      # (dy, dx, k, c, n, hh, ww)
    patches = t.reshape(4, 9 * Cin, Pp)
    patches = jnp.pad(patches, ((0, 0), (0, 0), (0, Pp_pad - Pp)))

    # torch conv1 weight (Cout,Cin,3,3) -> (Cout, 9*Cin) matching the tap order.
    k_lin = jnp.array([ky * 3 + kx for ky, kx in _TAP_ORDER])
    w1 = jnp.transpose(params["w1"], (0, 2, 3, 1)).reshape(Cout, 9, Cin)
    w1 = jnp.take(w1, k_lin, axis=1).reshape(Cout, 9 * Cin)
    wde = params["wde"][:, :, 0, 0]                  # (Cout, Cin)
    # Per-channel params packed into one input: [gamma, beta, bde].
    pcb = jnp.stack([params["gamma"], params["beta"], params["bde"]],
                    axis=1).astype(jnp.float32)
    # NOTE: conv bias b1 is intentionally unused (cancelled by BN mean subtraction).

    mxu_dtype = jnp.bfloat16 if use_bf16_mxu else jnp.float32
    patches = patches.astype(mxu_dtype)
    w1 = w1.astype(mxu_dtype)
    wde = wde.astype(mxu_dtype)

    # Per-step VMEM working set (patches / out tiles are double-buffered).
    mxu_b = 2 if use_bf16_mxu else 4
    vmem_est = (2 * 4 * 9 * Cin * tpp * mxu_b            # patches tile x2
                + 2 * c_blk * tpp * 4                     # out tile x2
                + 2 * c_blk * 10 * Cin * mxu_b            # w1 + wde x2
                + 2 * c_blk * 128 * 4                     # packed params (lane pad)
                + 12 * c_blk * tpp * 4                    # f32 intermediates
                + (2 << 20))
    vmem_limit = int(max(8 << 20, min(vmem_est, 56 << 20)))  # < v7x 64 MiB phys

    grid = (Cout // c_blk, 2, n_pt)    # (channel blocks, stats/normalize, P tiles)
    out = pl.pallas_call(
        functools.partial(bottleneck_kernel, cin=Cin, p_count=p_count),
        out_shape=jax.ShapeDtypeStruct((Cout, Pp_pad), jnp.float32),
        grid=grid,
        in_specs=[
            pl.BlockSpec((4, 9 * Cin, tpp), lambda c, ph, p: (0, 0, p)),
            pl.BlockSpec((c_blk, 9 * Cin), lambda c, ph, p: (c, 0)),
            pl.BlockSpec((c_blk, Cin), lambda c, ph, p: (c, 0)),
            pl.BlockSpec((c_blk, 3), lambda c, ph, p: (c, 0)),
        ],
        # Phase 0 never writes the output; pinning its block index at (c, 0)
        # means no stale writeback reaches HBM (phase 1 maps to (c, p)).
        out_specs=pl.BlockSpec((c_blk, tpp), lambda c, ph, p: (c, p * ph)),
        scratch_shapes=[pltpu.VMEM((c_blk, 1), jnp.float32),
                        pltpu.VMEM((c_blk, 1), jnp.float32)],
        compiler_params=pltpu.CompilerParams(
            dimension_semantics=("parallel", "arbitrary", "arbitrary"),
            vmem_limit_bytes=vmem_limit),
    )(patches, w1, wde, pcb)

    out = out[:, :Pp].reshape(Cout, N, Hh, Wh)
    # TODO(synk): skip this transpose if the consumer accepts C-major output.
    return jnp.transpose(out, (1, 0, 2, 3))              # NCHW


def bottleneck_reference(x_nchw, params):
    """Pure-JAX f32 reference of the PyTorch forward (for verification)."""
    x = jnp.transpose(x_nchw, (0, 2, 3, 1)).astype(jnp.float32)
    N, H, W, Cin = x.shape
    y = jax.lax.conv_general_dilated(
        x, jnp.transpose(params["w1"], (2, 3, 1, 0)),
        window_strides=(1, 1), padding=((1, 1), (1, 1)),
        dimension_numbers=("NHWC", "HWIO", "NHWC")) + params["b1"]
    mean = jnp.mean(y, axis=(0, 1, 2))
    var = jnp.mean((y - mean) ** 2, axis=(0, 1, 2))
    y = (y - mean) / jnp.sqrt(var + 1e-5) * params["gamma"] + params["beta"]
    de = jnp.einsum("nhwi,oi->nhwo", x, params["wde"][:, :, 0, 0]) + params["bde"]
    z = jnp.maximum(y + de, 0.0)
    Cout = params["w1"].shape[0]
    z = z.reshape(N, H // 2, 2, W // 2, 2, Cout).max(axis=(2, 4))
    return jnp.transpose(z, (0, 3, 1, 2))


def make_params(key, in_ch, out_ch):
    ks = jax.random.split(key, 6)
    s1 = 1.0 / (in_ch * 9) ** 0.5   # PyTorch conv default init scale
    sd = 1.0 / (in_ch * 1) ** 0.5
    return {
        "w1":   jax.random.uniform(ks[0], (out_ch, in_ch, 3, 3), jnp.float32, -s1, s1),
        "b1":   jax.random.uniform(ks[1], (out_ch,), jnp.float32, -s1, s1),
        "wde":  jax.random.uniform(ks[2], (out_ch, in_ch, 1, 1), jnp.float32, -sd, sd),
        "bde":  jax.random.uniform(ks[3], (out_ch,), jnp.float32, -sd, sd),
        "gamma": 1.0 + 0.1 * jax.random.normal(ks[4], (out_ch,), jnp.float32),
        "beta": 0.1 * jax.random.normal(ks[5], (out_ch,), jnp.float32),
    }


if __name__ == "__main__":
    key = jax.random.PRNGKey(0)
    k_x, k_p = jax.random.split(key)
    N, Cin, Cout, H, W = 2, 4, 8, 16, 16

    x = jax.random.normal(k_x, (N, Cin, H, W), jnp.float32)
    params = make_params(k_p, Cin, Cout)
    ref = bottleneck_reference(x, params)

    # Exact-semantics path (f32 MXU operands): tight check vs the f32 reference.
    out_f32 = jax.block_until_ready(bottleneck_forward(x, params, use_bf16_mxu=False))
    assert out_f32.shape == (N, Cout, H // 2, W // 2), out_f32.shape
    assert jnp.allclose(out_f32, ref, rtol=1e-3, atol=1e-3), \
        float(jnp.max(jnp.abs(out_f32 - ref)))

    # Performance path (bf16 MXU operands, f32 accumulation / elementwise).
    out_bf16 = jax.block_until_ready(bottleneck_forward(x, params, use_bf16_mxu=True))
    assert out_bf16.shape == (N, Cout, H // 2, W // 2), out_bf16.shape
    assert jnp.allclose(out_bf16, ref, rtol=3e-2, atol=3e-2), \
        float(jnp.max(jnp.abs(out_bf16 - ref)))

    print("KERNEL_OK")
</pallas_src>

<mosaic_0001>
module attributes {stable_mosaic.version = 11 : i64} {
  func.func @bottleneck_kernel(%arg0: i32, %arg1: i32, %arg2: i32, %arg3: memref<4x36x128xf32, #tpu.memory_space<vmem>>, %arg4: memref<8x36xf32, #tpu.memory_space<vmem>>, %arg5: memref<8x4xf32, #tpu.memory_space<vmem>>, %arg6: memref<8x3xf32, #tpu.memory_space<vmem>>, %arg7: memref<8x128xf32, #tpu.memory_space<vmem>>, %arg8: memref<8x1xf32, #tpu.memory_space<vmem>>, %arg9: memref<8x1xf32, #tpu.memory_space<vmem>>) attributes {dimension_semantics = [#tpu.dimension_semantics<parallel>, #tpu.dimension_semantics<arbitrary>, #tpu.dimension_semantics<arbitrary>], iteration_bounds = array<i64: 1, 2, 1>, scalar_prefetch = 0 : i64, scratch_operands = 2 : i64, tpu.core_type = #tpu.core_type<tc>, window_params = [{transform_indices = @transform_0, window_bounds = array<i64: 4, 36, 128>}, {transform_indices = @transform_1, window_bounds = array<i64: 8, 36>}, {transform_indices = @transform_2, window_bounds = array<i64: 8, 4>}, {transform_indices = @transform_3, window_bounds = array<i64: 8, 3>}, {transform_indices = @transform_4, window_bounds = array<i64: 8, 128>}]} {
    %c0 = arith.constant 0 : index
    %c0_0 = arith.constant 0 : index
    %0 = vector.load %arg4[%c0, %c0_0] : memref<8x36xf32, #tpu.memory_space<vmem>>, vector<8x36xf32>
    %c0_i32 = arith.constant 0 : i32
    %1 = arith.cmpi eq, %arg1, %c0_i32 : i32
    %c0_i32_1 = arith.constant 0 : i32
    %2 = arith.cmpi eq, %arg2, %c0_i32_1 : i32
    %3 = arith.andi %1, %2 : i1
    %4 = arith.extui %3 : i1 to i32
    %c0_i32_2 = arith.constant 0 : i32
    %5 = arith.cmpi ne, %4, %c0_i32_2 : i32
    scf.if %5 {
      %cst = arith.constant 0.000000e+00 : f32
      %12 = vector.broadcast %cst : f32 to vector<8x1xf32>
      %c0_6 = arith.constant 0 : index
      %c0_7 = arith.constant 0 : index
      %13 = vector.load %arg8[%c0_6, %c0_7] : memref<8x1xf32, #tpu.memory_space<vmem>>, vector<8x1xf32>
      tpu.vector_store %arg8[%c0_6, %c0_7], %12 {strides = array<i32>} : memref<8x1xf32, #tpu.memory_space<vmem>>, vector<8x1xf32>,
      %cst_8 = arith.constant 0.000000e+00 : f32
      %14 = vector.broadcast %cst_8 : f32 to vector<8x1xf32>
      %c0_9 = arith.constant 0 : index
      %c0_10 = arith.constant 0 : index
      %15 = vector.load %arg9[%c0_9, %c0_10] : memref<8x1xf32, #tpu.memory_space<vmem>>, vector<8x1xf32>
      tpu.vector_store %arg9[%c0_9, %c0_10], %14 {strides = array<i32>} : memref<8x1xf32, #tpu.memory_space<vmem>>, vector<8x1xf32>,
    } else {
    }
    %c0_i32_3 = arith.constant 0 : i32
    %6 = arith.cmpi eq, %arg1, %c0_i32_3 : i32
    %7 = arith.extui %6 : i1 to i32
    %c0_i32_4 = arith.constant 0 : i32
    %8 = arith.cmpi ne, %7, %c0_i32_4 : i32
    scf.if %8 {
      %cst = arith.constant 0.000000e+00 : f32
      %12 = vector.broadcast %cst : f32 to vector<8x1xf32>
      %cst_6 = arith.constant 0.000000e+00 : f32
      %13 = vector.broadcast %cst_6 : f32 to vector<8x1xf32>
      %c0_7 = arith.constant 0 : index
      %c0_8 = arith.constant 0 : index
      %c0_9 = arith.constant 0 : index
      %14 = vector.load %arg3[%c0_7, %c0_8, %c0_9] : memref<4x36x128xf32, #tpu.memory_space<vmem>>, vector<1x36x128xf32>
      %15 = vector.shape_cast %14 : vector<1x36x128xf32> to vector<36x128xf32>
      %cst_10 = arith.constant dense<0.000000e+00> : vector<8x128xf32>
      %16 = tpu.matmul %0, %15, %cst_10 {dimension_numbers = #tpu.dot_dimension_numbers<[1], [0], [0], [1], [0, 0, 1, 1], [], []>} : vector<8x36xf32>, vector<36x128xf32>, vector<8x128xf32> -> vector<8x128xf32>
      %cst_11 = arith.constant dense<0.000000e+00> : vector<8xf32>
      %17 = vector.multi_reduction <add>, %16, %cst_11 [1] : vector<8x128xf32> to vector<8xf32>
      %18 = vector.shape_cast %17 : vector<8xf32> to vector<8x1xf32>
      %19 = arith.addf %12, %18 : vector<8x1xf32>
      %20 = arith.mulf %16, %16 : vector<8x128xf32>
      %cst_12 = arith.constant dense<0.000000e+00> : vector<8xf32>
      %21 = vector.multi_reduction <add>, %20, %cst_12 [1] : vector<8x128xf32> to vector<8xf32>
      %22 = vector.shape_cast %21 : vector<8xf32> to vector<8x1xf32>
      %23 = arith.addf %13, %22 : vector<8x1xf32>
      %c1 = arith.constant 1 : index
      %c0_13 = arith.constant 0 : index
      %c0_14 = arith.constant 0 : index
      %24 = vector.load %arg3[%c1, %c0_13, %c0_14] : memref<4x36x128xf32, #tpu.memory_space<vmem>>, vector<1x36x128xf32>
      %25 = vector.shape_cast %24 : vector<1x36x128xf32> to vector<36x128xf32>
      %cst_15 = arith.constant dense<0.000000e+00> : vector<8x128xf32>
      %26 = tpu.matmul %0, %25, %cst_15 {dimension_numbers = #tpu.dot_dimension_numbers<[1], [0], [0], [1], [0, 0, 1, 1], [], []>} : vector<8x36xf32>, vector<36x128xf32>, vector<8x128xf32> -> vector<8x128xf32>
      %cst_16 = arith.constant dense<0.000000e+00> : vector<8xf32>
      %27 = vector.multi_reduction <add>, %26, %cst_16 [1] : vector<8x128xf32> to vector<8xf32>
      %28 = vector.shape_cast %27 : vector<8xf32> to vector<8x1xf32>
      %29 = arith.addf %19, %28 : vector<8x1xf32>
      %30 = arith.mulf %26, %26 : vector<8x128xf32>
      %cst_17 = arith.constant dense<0.000000e+00> : vector<8xf32>
      %31 = vector.multi_reduction <add>, %30, %cst_17 [1] : vector<8x128xf32> to vector<8xf32>
      %32 = vector.shape_cast %31 : vector<8xf32> to vector<8x1xf32>
      %33 = arith.addf %23, %32 : vector<8x1xf32>
      %c2 = arith.constant 2 : index
      %c0_18 = arith.constant 0 : index
      %c0_19 = arith.constant 0 : index
      %34 = vector.load %arg3[%c2, %c0_18, %c0_19] : memref<4x36x128xf32, #tpu.memory_space<vmem>>, vector<1x36x128xf32>
      %35 = vector.shape_cast %34 : vector<1x36x128xf32> to vector<36x128xf32>
      %cst_20 = arith.constant dense<0.000000e+00> : vector<8x128xf32>
      %36 = tpu.matmul %0, %35, %cst_20 {dimension_numbers = #tpu.dot_dimension_numbers<[1], [0], [0], [1], [0, 0, 1, 1], [], []>} : vector<8x36xf32>, vector<36x128xf32>, vector<8x128xf32> -> vector<8x128xf32>
      %cst_21 = arith.constant dense<0.000000e+00> : vector<8xf32>
      %37 = vector.multi_reduction <add>, %36, %cst_21 [1] : vector<8x128xf32> to vector<8xf32>
      %38 = vector.shape_cast %37 : vector<8xf32> to vector<8x1xf32>
      %39 = arith.addf %29, %38 : vector<8x1xf32>
      %40 = arith.mulf %36, %36 : vector<8x128xf32>
      %cst_22 = arith.constant dense<0.000000e+00> : vector<8xf32>
      %41 = vector.multi_reduction <add>, %40, %cst_22 [1] : vector<8x128xf32> to vector<8xf32>
      %42 = vector.shape_cast %41 : vector<8xf32> to vector<8x1xf32>
      %43 = arith.addf %33, %42 : vector<8x1xf32>
      %c3 = arith.constant 3 : index
      %c0_23 = arith.constant 0 : index
      %c0_24 = arith.constant 0 : index
      %44 = vector.load %arg3[%c3, %c0_23, %c0_24] : memref<4x36x128xf32, #tpu.memory_space<vmem>>, vector<1x36x128xf32>
      %45 = vector.shape_cast %44 : vector<1x36x128xf32> to vector<36x128xf32>
      %cst_25 = arith.constant dense<0.000000e+00> : vector<8x128xf32>
      %46 = tpu.matmul %0, %45, %cst_25 {dimension_numbers = #tpu.dot_dimension_numbers<[1], [0], [0], [1], [0, 0, 1, 1], [], []>} : vector<8x36xf32>, vector<36x128xf32>, vector<8x128xf32> -> vector<8x128xf32>
      %cst_26 = arith.constant dense<0.000000e+00> : vector<8xf32>
      %47 = vector.multi_reduction <add>, %46, %cst_26 [1] : vector<8x128xf32> to vector<8xf32>
      %48 = vector.shape_cast %47 : vector<8xf32> to vector<8x1xf32>
      %49 = arith.addf %39, %48 : vector<8x1xf32>
      %50 = arith.mulf %46, %46 : vector<8x128xf32>
      %cst_27 = arith.constant dense<0.000000e+00> : vector<8xf32>
      %51 = vector.multi_reduction <add>, %50, %cst_27 [1] : vector<8x128xf32> to vector<8xf32>
      %52 = vector.shape_cast %51 : vector<8xf32> to vector<8x1xf32>
      %53 = arith.addf %43, %52 : vector<8x1xf32>
      %c0_28 = arith.constant 0 : index
      %c0_29 = arith.constant 0 : index
      %54 = vector.load %arg8[%c0_28, %c0_29] : memref<8x1xf32, #tpu.memory_space<vmem>>, vector<8x1xf32>
      %55 = arith.addf %54, %49 : vector<8x1xf32>
      %c0_30 = arith.constant 0 : index
      %c0_31 = arith.constant 0 : index
      %56 = vector.load %arg8[%c0_30, %c0_31] : memref<8x1xf32, #tpu.memory_space<vmem>>, vector<8x1xf32>
      tpu.vector_store %arg8[%c0_30, %c0_31], %55 {strides = array<i32>} : memref<8x1xf32, #tpu.memory_space<vmem>>, vector<8x1xf32>,
      %c0_32 = arith.constant 0 : index
      %c0_33 = arith.constant 0 : index
      %57 = vector.load %arg9[%c0_32, %c0_33] : memref<8x1xf32, #tpu.memory_space<vmem>>, vector<8x1xf32>
      %58 = arith.addf %57, %53 : vector<8x1xf32>
      %c0_34 = arith.constant 0 : index
      %c0_35 = arith.constant 0 : index
      %59 = vector.load %arg9[%c0_34, %c0_35] : memref<8x1xf32, #tpu.memory_space<vmem>>, vector<8x1xf32>
      tpu.vector_store %arg9[%c0_34, %c0_35], %58 {strides = array<i32>} : memref<8x1xf32, #tpu.memory_space<vmem>>, vector<8x1xf32>,
    } else {
    }
    %c1_i32 = arith.constant 1 : i32
    %9 = arith.cmpi eq, %arg1, %c1_i32 : i32
    %10 = arith.extui %9 : i1 to i32
    %c0_i32_5 = arith.constant 0 : i32
    %11 = arith.cmpi ne, %10, %c0_i32_5 : i32
    scf.if %11 {
      %c0_6 = arith.constant 0 : index
      %c0_7 = arith.constant 0 : index
      %12 = vector.load %arg8[%c0_6, %c0_7] : memref<8x1xf32, #tpu.memory_space<vmem>>, vector<8x1xf32>
      %cst = arith.constant 0.001953125 : f32
      %13 = vector.broadcast %cst : f32 to vector<8x1xf32>
      %14 = arith.mulf %12, %13 : vector<8x1xf32>
      %c0_8 = arith.constant 0 : index
      %c0_9 = arith.constant 0 : index
      %15 = vector.load %arg9[%c0_8, %c0_9] : memref<8x1xf32, #tpu.memory_space<vmem>>, vector<8x1xf32>
      %cst_10 = arith.constant 0.001953125 : f32
      %16 = vector.broadcast %cst_10 : f32 to vector<8x1xf32>
      %17 = arith.mulf %15, %16 : vector<8x1xf32>
      %18 = arith.mulf %14, %14 : vector<8x1xf32>
      %19 = arith.subf %17, %18 : vector<8x1xf32>
      %cst_11 = arith.constant 0.000000e+00 : f32
      %20 = vector.broadcast %cst_11 : f32 to vector<8x1xf32>
      %21 = arith.maximumf %19, %20 : vector<8x1xf32>
      %c0_12 = arith.constant 0 : index
      %c0_13 = arith.constant 0 : index
      %22 = vector.load %arg6[%c0_12, %c0_13] : memref<8x3xf32, #tpu.memory_space<vmem>>, vector<8x1xf32>
      %cst_14 = arith.constant 9.99999974E-6 : f32
      %23 = vector.broadcast %cst_14 : f32 to vector<8x1xf32>
      %24 = arith.addf %21, %23 : vector<8x1xf32>
      %25 = math.rsqrt %24 : vector<8x1xf32>
      %26 = arith.mulf %22, %25 : vector<8x1xf32>
      %c0_15 = arith.constant 0 : index
      %c1 = arith.constant 1 : index
      %27 = vector.load %arg6[%c0_15, %c1] : memref<8x3xf32, #tpu.memory_space<vmem>>, vector<8x1xf32>
      %28 = arith.mulf %14, %26 : vector<8x1xf32>
      %29 = arith.subf %27, %28 : vector<8x1xf32>
      %c0_16 = arith.constant 0 : index
      %c2 = arith.constant 2 : index
      %30 = vector.load %arg6[%c0_16, %c2] : memref<8x3xf32, #tpu.memory_space<vmem>>, vector<8x1xf32>
      %31 = arith.addf %29, %30 : vector<8x1xf32>
      %c0_17 = arith.constant 0 : index
      %c0_18 = arith.constant 0 : index
      %32 = vector.load %arg5[%c0_17, %c0_18] : memref<8x4xf32, #tpu.memory_space<vmem>>, vector<8x4xf32>
      %c0_19 = arith.constant 0 : index
      %c0_20 = arith.constant 0 : index
      %c0_21 = arith.constant 0 : index
      %33 = vector.load %arg3[%c0_19, %c0_20, %c0_21] : memref<4x36x128xf32, #tpu.memory_space<vmem>>, vector<1x36x128xf32>
      %34 = vector.shape_cast %33 : vector<1x36x128xf32> to vector<36x128xf32>
      %cst_22 = arith.constant dense<0.000000e+00> : vector<8x128xf32>
      %35 = tpu.matmul %0, %34, %cst_22 {dimension_numbers = #tpu.dot_dimension_numbers<[1], [0], [0], [1], [0, 0, 1, 1], [], []>} : vector<8x36xf32>, vector<36x128xf32>, vector<8x128xf32> -> vector<8x128xf32>
      %36 = vector.extract_strided_slice %34 {offsets = [0, 0], sizes = [4, 128], strides = [1, 1]} : vector<36x128xf32> to vector<4x128xf32>
      %cst_23 = arith.constant dense<0.000000e+00> : vector<8x128xf32>
      %37 = tpu.matmul %32, %36, %cst_23 {dimension_numbers = #tpu.dot_dimension_numbers<[1], [0], [0], [1], [0, 0, 1, 1], [], []>} : vector<8x4xf32>, vector<4x128xf32>, vector<8x128xf32> -> vector<8x128xf32>
      %38 = vector.broadcast %26 : vector<8x1xf32> to vector<8x128xf32>
      %39 = arith.mulf %35, %38 : vector<8x128xf32>
      %40 = arith.addf %39, %37 : vector<8x128xf32>
      %41 = vector.broadcast %31 : vector<8x1xf32> to vector<8x128xf32>
      %42 = arith.addf %40, %41 : vector<8x128xf32>
      %cst_24 = arith.constant 0.000000e+00 : f32
      %43 = vector.broadcast %cst_24 : f32 to vector<8x128xf32>
      %44 = arith.maximumf %42, %43 : vector<8x128xf32>
      %c1_25 = arith.constant 1 : index
      %c0_26 = arith.constant 0 : index
      %c0_27 = arith.constant 0 : index
      %45 = vector.load %arg3[%c1_25, %c0_26, %c0_27] : memref<4x36x128xf32, #tpu.memory_space<vmem>>, vector<1x36x128xf32>
      %46 = vector.shape_cast %45 : vector<1x36x128xf32> to vector<36x128xf32>
      %cst_28 = arith.constant dense<0.000000e+00> : vector<8x128xf32>
      %47 = tpu.matmul %0, %46, %cst_28 {dimension_numbers = #tpu.dot_dimension_numbers<[1], [0], [0], [1], [0, 0, 1, 1], [], []>} : vector<8x36xf32>, vector<36x128xf32>, vector<8x128xf32> -> vector<8x128xf32>
      %48 = vector.extract_strided_slice %46 {offsets = [0, 0], sizes = [4, 128], strides = [1, 1]} : vector<36x128xf32> to vector<4x128xf32>
      %cst_29 = arith.constant dense<0.000000e+00> : vector<8x128xf32>
      %49 = tpu.matmul %32, %48, %cst_29 {dimension_numbers = #tpu.dot_dimension_numbers<[1], [0], [0], [1], [0, 0, 1, 1], [], []>} : vector<8x4xf32>, vector<4x128xf32>, vector<8x128xf32> -> vector<8x128xf32>
      %50 = vector.broadcast %26 : vector<8x1xf32> to vector<8x128xf32>
      %51 = arith.mulf %47, %50 : vector<8x128xf32>
      %52 = arith.addf %51, %49 : vector<8x128xf32>
      %53 = vector.broadcast %31 : vector<8x1xf32> to vector<8x128xf32>
      %54 = arith.addf %52, %53 : vector<8x128xf32>
      %cst_30 = arith.constant 0.000000e+00 : f32
      %55 = vector.broadcast %cst_30 : f32 to vector<8x128xf32>
      %56 = arith.maximumf %54, %55 : vector<8x128xf32>
      %57 = arith.maximumf %44, %56 : vector<8x128xf32>
      %c2_31 = arith.constant 2 : index
      %c0_32 = arith.constant 0 : index
      %c0_33 = arith.constant 0 : index
      %58 = vector.load %arg3[%c2_31, %c0_32, %c0_33] : memref<4x36x128xf32, #tpu.memory_space<vmem>>, vector<1x36x128xf32>
      %59 = vector.shape_cast %58 : vector<1x36x128xf32> to vector<36x128xf32>
      %cst_34 = arith.constant dense<0.000000e+00> : vector<8x128xf32>
      %60 = tpu.matmul %0, %59, %cst_34 {dimension_numbers = #tpu.dot_dimension_numbers<[1], [0], [0], [1], [0, 0, 1, 1], [], []>} : vector<8x36xf32>, vector<36x128xf32>, vector<8x128xf32> -> vector<8x128xf32>
      %61 = vector.extract_strided_slice %59 {offsets = [0, 0], sizes = [4, 128], strides = [1, 1]} : vector<36x128xf32> to vector<4x128xf32>
      %cst_35 = arith.constant dense<0.000000e+00> : vector<8x128xf32>
      %62 = tpu.matmul %32, %61, %cst_35 {dimension_numbers = #tpu.dot_dimension_numbers<[1], [0], [0], [1], [0, 0, 1, 1], [], []>} : vector<8x4xf32>, vector<4x128xf32>, vector<8x128xf32> -> vector<8x128xf32>
      %63 = vector.broadcast %26 : vector<8x1xf32> to vector<8x128xf32>
      %64 = arith.mulf %60, %63 : vector<8x128xf32>
      %65 = arith.addf %64, %62 : vector<8x128xf32>
      %66 = vector.broadcast %31 : vector<8x1xf32> to vector<8x128xf32>
      %67 = arith.addf %65, %66 : vector<8x128xf32>
      %cst_36 = arith.constant 0.000000e+00 : f32
      %68 = vector.broadcast %cst_36 : f32 to vector<8x128xf32>
      %69 = arith.maximumf %67, %68 : vector<8x128xf32>
      %70 = arith.maximumf %57, %69 : vector<8x128xf32>
      %c3 = arith.constant 3 : index
      %c0_37 = arith.constant 0 : index
      %c0_38 = arith.constant 0 : index
      %71 = vector.load %arg3[%c3, %c0_37, %c0_38] : memref<4x36x128xf32, #tpu.memory_space<vmem>>, vector<1x36x128xf32>
      %72 = vector.shape_cast %71 : vector<1x36x128xf32> to vector<36x128xf32>
      %cst_39 = arith.constant dense<0.000000e+00> : vector<8x128xf32>
      %73 = tpu.matmul %0, %72, %cst_39 {dimension_numbers = #tpu.dot_dimension_numbers<[1], [0], [0], [1], [0, 0, 1, 1], [], []>} : vector<8x36xf32>, vector<36x128xf32>, vector<8x128xf32> -> vector<8x128xf32>
      %74 = vector.extract_strided_slice %72 {offsets = [0, 0], sizes = [4, 128], strides = [1, 1]} : vector<36x128xf32> to vector<4x128xf32>
      %cst_40 = arith.constant dense<0.000000e+00> : vector<8x128xf32>
      %75 = tpu.matmul %32, %74, %cst_40 {dimension_numbers = #tpu.dot_dimension_numbers<[1], [0], [0], [1], [0, 0, 1, 1], [], []>} : vector<8x4xf32>, vector<4x128xf32>, vector<8x128xf32> -> vector<8x128xf32>
      %76 = vector.broadcast %26 : vector<8x1xf32> to vector<8x128xf32>
      %77 = arith.mulf %73, %76 : vector<8x128xf32>
      %78 = arith.addf %77, %75 : vector<8x128xf32>
      %79 = vector.broadcast %31 : vector<8x1xf32> to vector<8x128xf32>
      %80 = arith.addf %78, %79 : vector<8x128xf32>
      %cst_41 = arith.constant 0.000000e+00 : f32
      %81 = vector.broadcast %cst_41 : f32 to vector<8x128xf32>
      %82 = arith.maximumf %80, %81 : vector<8x128xf32>
      %83 = arith.maximumf %70, %82 : vector<8x128xf32>
      %c0_42 = arith.constant 0 : index
      %c0_43 = arith.constant 0 : index
      %84 = vector.load %arg7[%c0_42, %c0_43] : memref<8x128xf32, #tpu.memory_space<vmem>>, vector<8x128xf32>
      tpu.vector_store %arg7[%c0_42, %c0_43], %83 {strides = array<i32>} : memref<8x128xf32, #tpu.memory_space<vmem>>, vector<8x128xf32>,
    } else {
    }
    return
  }
  func.func @transform_0(%arg0: i32, %arg1: i32, %arg2: i32) -> (i32, i32, i32) {
    %c0_i32 = arith.constant 0 : i32
    %c0_i32_0 = arith.constant 0 : i32
    %c0_i32_1 = arith.constant 0 : i32
    return %c0_i32, %c0_i32_0, %arg2 : i32, i32, i32
  }
  func.func @transform_1(%arg0: i32, %arg1: i32, %arg2: i32) -> (i32, i32) {
    %c0_i32 = arith.constant 0 : i32
    %c0_i32_0 = arith.constant 0 : i32
    return %arg0, %c0_i32 : i32, i32
  }
  func.func @transform_2(%arg0: i32, %arg1: i32, %arg2: i32) -> (i32, i32) {
    %c0_i32 = arith.constant 0 : i32
    %c0_i32_0 = arith.constant 0 : i32
    return %arg0, %c0_i32 : i32, i32
  }
  func.func @transform_3(%arg0: i32, %arg1: i32, %arg2: i32) -> (i32, i32) {
    %c0_i32 = arith.constant 0 : i32
    %c0_i32_0 = arith.constant 0 : i32
    return %arg0, %c0_i32 : i32, i32
  }
  func.func @transform_4(%arg0: i32, %arg1: i32, %arg2: i32) -> (i32, i32) {
    %0 = arith.muli %arg2, %arg1 : i32
    %c0_i32 = arith.constant 0 : i32
    return %arg0, %0 : i32, i32
  }
}

</mosaic_0001>

<llo_original>
// kernel: bottleneck_forward.1
$region0: #{bottleneck_forward.1}
  #allocation0 [shape = 'u32[]', space=smem, size = 0x4, offset = 0x4, fixed_abs, tag = 'smem constant byte address 0x4 - core index']
  #allocation1 [shape = 'u32[144,128]{1,0:T(1,128)}', space=vmem, size = 0x12000, scoped, tag = 'internal scratch']
  #allocation2 [shape = 'f32[8,1]{1,0:T(8,128)}', space=vmem, size = 0x1000, scoped, tag = 'scratch operand']
  #allocation3 [shape = 'f32[8,1]{1,0:T(8,128)}', space=vmem, size = 0x1000, scoped, tag = 'scratch operand']
  %s0 = inlined_call_operand.vmem [shape: f32[4,36,128], index: 0, kind: input, shape index: {}]
  %s1 = inlined_call_operand.vmem [shape: f32[8,36], index: 1, kind: input, shape index: {}]
  %s2 = inlined_call_operand.vmem [shape: f32[8,4], index: 2, kind: input, shape index: {}]
  %s3 = inlined_call_operand.vmem [shape: f32[8,3], index: 3, kind: input, shape index: {}]
  %s4 = inlined_call_operand.vmem [shape: f32[8,128], index: 4, kind: output, shape index: {}]
  %s5 = sld [smem:[#allocation0]]
  $region61: #{bottleneck_forward.1} parent=0
    _
  %s7 = ssub.s32 1, %s5
  %s8 = scalar_select 0, %s7, %s5
  loop: start=0, step=1, limit=4
  $region2: #{bottleneck_forward.1} parent=0 // loop_pre_header
    _
  $region3: #{bottleneck_forward.1} parent=0 // loop_header
    %s10 = sphi 0, %s14
    %p11 = scmp.ge.s32.totalorder %s10, 4
    %s17 = sphi 0, %s36
    %s18 = sphi 0, %s32
    %s19 = sphi 0, %s28
    %s20 = sphi 0, %s17
    %s21 = sphi 0, %s18
    %s22 = sphi 0, %s19
    %s23 = sphi 0, %s20
    %s24 = sphi 0, %s21
    %s25 = sphi 0, %s22
    %s39 = sphi 0, %s41
    %s42 = sphi 0, %s39
    %s43 = sphi 0, %s42
    %s59 = sphi 0, %s43
    %s65 = sphi 0, %s67
    %s68 = sphi 0, %s65
    %s69 = sphi 0, %s68
    %s85 = sphi 0, %s69
    %s91 = sphi 0, %s93
    %s94 = sphi 0, %s91
    %s95 = sphi 0, %s94
    %s111 = sphi 0, %s95
    %s117 = sphi 0, %s119
    %s120 = sphi 0, %s117
    %s121 = sphi 0, %s120
    %s137 = sphi 0, %s121
    %s147 = sphi 0, %s149
    %s150 = sphi 0, %s147
    %s151 = sphi 0, %s150
    %s167 = sphi 0, %s151
  $region4: #{bottleneck_forward.1} parent=0 // loop_header_branch
    %13 = sbr.rel (%p11) target = $region8
  $region5: #{bottleneck_forward.1} parent=0 // loop_body
    %s15 = ssub.s32 %s10, 1
    %s16 = ssub.s32 %s10, 2
    %s26 = sadd.s32 1, %s19
    %p27 = scmp.ge.s32.totalorder %s26, 1
    %s28 = scalar_select %p27, 0, %s26
    %s29 = sadd.s32 1, %s18
    %s30 = scalar_select %p27, %s29, %s18
    %p31 = scmp.ge.s32.totalorder %s30, 2
    %s32 = scalar_select %p31, 0, %s30
    %s33 = sadd.s32 1, %s17
    %s34 = scalar_select %p31, %s33, %s17
    %p35 = scmp.ge.s32.totalorder %s34, 1
    %s36 = scalar_select %p35, 0, %s34
    %s37 = ssub.s32 %s19, %s28
    %p38 = scmp.eq.s32.totalorder %s37, 0
    %s40 = sadd.s32 %s39, 1
    %s41 = scalar_select %p38, %s39, %s40
    %p44 = pneg %p38
    %p45 = scmp.eq.s32.totalorder %s10, 1
    %p46 = por %p44, %p45
    %p47 = scmp.ne.s32.totalorder %s39, %s42
    %p48 = scmp.eq.s32.totalorder %s10, 0
    %p49 = por %p47, %p48
    %p50 = scmp.ne.s32.totalorder %s39, %s42
    %p51 = scmp.eq.s32.totalorder %s15, 1
    %p52 = por %p50, %p51
    %p53 = scmp.ne.s32.totalorder %s42, %s43
    %p54 = scmp.eq.s32.totalorder %s15, 0
    %p55 = por %p53, %p54
    %p56 = scmp.ne.s32.totalorder %s42, %s43
    %p57 = scmp.eq.s32.totalorder %s16, 1
    %p58 = por %p56, %p57
    %p60 = scmp.ne.s32.totalorder %s43, %s59
    %p61 = scmp.eq.s32.totalorder %s16, 0
    %p62 = por %p60, %p61
    %s63 = ssub.s32 %s17, %s36
    %p64 = scmp.eq.s32.totalorder %s63, 0
    %s66 = sadd.s32 %s65, 1
    %s67 = scalar_select %p64, %s65, %s66
    %p70 = pneg %p64
    %p71 = scmp.eq.s32.totalorder %s10, 1
    %p72 = por %p70, %p71
    %p73 = scmp.ne.s32.totalorder %s65, %s68
    %p74 = scmp.eq.s32.totalorder %s10, 0
    %p75 = por %p73, %p74
    %p76 = scmp.ne.s32.totalorder %s65, %s68
    %p77 = scmp.eq.s32.totalorder %s15, 1
    %p78 = por %p76, %p77
    %p79 = scmp.ne.s32.totalorder %s68, %s69
    %p80 = scmp.eq.s32.totalorder %s15, 0
    %p81 = por %p79, %p80
    %p82 = scmp.ne.s32.totalorder %s68, %s69
    %p83 = scmp.eq.s32.totalorder %s16, 1
    %p84 = por %p82, %p83
    %p86 = scmp.ne.s32.totalorder %s69, %s85
    %p87 = scmp.eq.s32.totalorder %s16, 0
    %p88 = por %p86, %p87
    %s89 = ssub.s32 %s17, %s36
    %p90 = scmp.eq.s32.totalorder %s89, 0
    %s92 = sadd.s32 %s91, 1
    %s93 = scalar_select %p90, %s91, %s92
    %p96 = pneg %p90
    %p97 = scmp.eq.s32.totalorder %s10, 1
    %p98 = por %p96, %p97
    %p99 = scmp.ne.s32.totalorder %s91, %s94
    %p100 = scmp.eq.s32.totalorder %s10, 0
    %p101 = por %p99, %p100
    %p102 = scmp.ne.s32.totalorder %s91, %s94
    %p103 = scmp.eq.s32.totalorder %s15, 1
    %p104 = por %p102, %p103
    %p105 = scmp.ne.s32.totalorder %s94, %s95
    %p106 = scmp.eq.s32.totalorder %s15, 0
    %p107 = por %p105, %p106
    %p108 = scmp.ne.s32.totalorder %s94, %s95
    %p109 = scmp.eq.s32.totalorder %s16, 1
    %p110 = por %p108, %p109
    %p112 = scmp.ne.s32.totalorder %s95, %s111
    %p113 = scmp.eq.s32.totalorder %s16, 0
    %p114 = por %p112, %p113
    %s115 = ssub.s32 %s17, %s36
    %p116 = scmp.eq.s32.totalorder %s115, 0
    %s118 = sadd.s32 %s117, 1
    %s119 = scalar_select %p116, %s117, %s118
    %p122 = pneg %p116
    %p123 = scmp.eq.s32.totalorder %s10, 1
    %p124 = por %p122, %p123
    %p125 = scmp.ne.s32.totalorder %s117, %s120
    %p126 = scmp.eq.s32.totalorder %s10, 0
    %p127 = por %p125, %p126
    %p128 = scmp.ne.s32.totalorder %s117, %s120
    %p129 = scmp.eq.s32.totalorder %s15, 1
    %p130 = por %p128, %p129
    %p131 = scmp.ne.s32.totalorder %s120, %s121
    %p132 = scmp.eq.s32.totalorder %s15, 0
    %p133 = por %p131, %p132
    %p134 = scmp.ne.s32.totalorder %s120, %s121
    %p135 = scmp.eq.s32.totalorder %s16, 1
    %p136 = por %p134, %p135
    %p138 = scmp.ne.s32.totalorder %s121, %s137
    %p139 = scmp.eq.s32.totalorder %s16, 0
    %p140 = por %p138, %p139
    %s141 = smul.u32 %s19, %s18
    %s142 = smul.u32 %s28, %s32
    %s143 = ssub.s32 %s17, %s36
    %s144 = ssub.s32 %s141, %s142
    %s145 = sor.u32 %s143, %s144
    %p146 = scmp.eq.s32.totalorder %s145, 0
    %s148 = sadd.s32 %s147, 1
    %s149 = scalar_select %p146, %s147, %s148
    %p152 = pneg %p146
    %p153 = scmp.eq.s32.totalorder %s10, 1
    %p154 = por %p152, %p153
    %p155 = scmp.ne.s32.totalorder %s147, %s150
    %p156 = scmp.eq.s32.totalorder %s10, 0
    %p157 = por %p155, %p156
    %p158 = scmp.ne.s32.totalorder %s147, %s150
    %p159 = scmp.eq.s32.totalorder %s15, 1
    %p160 = por %p158, %p159
    %p161 = scmp.ne.s32.totalorder %s150, %s151
    %p162 = scmp.eq.s32.totalorder %s15, 0
    %p163 = por %p161, %p162
    %p164 = scmp.ne.s32.totalorder %s150, %s151
    %p165 = scmp.eq.s32.totalorder %s16, 1
    %p166 = por %p164, %p165
    %p168 = scmp.ne.s32.totalorder %s151, %s167
    %p169 = scmp.eq.s32.totalorder %s16, 0
    %p170 = por %p168, %p169
    %p171 = scmp.le.s32.totalorder 1, %s10
    %p172 = scmp.lt.s32.totalorder %s10, 3
    %p173 = pnand %p171, %p172
    %p174 = pneg %p173
    // Predicated region
    $region9: #{bottleneck_forward.1} parent=5 // pred_check
      _
    $region10: #{bottleneck_forward.1} parent=5 // pred_check_branch
      %176 = sbr.rel (%p173) target = $region12
    $region11: #{bottleneck_forward.1} parent=5 // pred_region
      %s177 = ssub.s32 %s10, 1
      // Predicated region
      $region13: #{bottleneck_forward.1} parent=11 // pred_check
        %p178 = pneg %p55
      $region14: #{bottleneck_forward.1} parent=11 // pred_check_branch
        %180 = sbr.rel (%p178) target = $region16
      $region15: #{bottleneck_forward.1} parent=11 // pred_region
        %p181 = scmp.lt.s32.totalorder %s22, 0
        %s182 = scalar_select %p181, %s22, 0
        %s183 = smul.addr %s182, 8
        %s184 = scalar_lea.vmem %s0, %s183
      $region16: #{bottleneck_forward.1} parent=11 // pred_fallthru
        _
      // Predicated region
      $region17: #{bottleneck_forward.1} parent=11 // pred_check
        %p185 = pneg %p81
      $region18: #{bottleneck_forward.1} parent=11 // pred_check_branch
        %187 = sbr.rel (%p185) target = $region20
      $region19: #{bottleneck_forward.1} parent=11 // pred_region
        %p188 = scmp.lt.s32.totalorder %s20, 0
        %s189 = scalar_select %p188, %s20, 0
        %s190 = smul.addr %s189, 8
        %s191 = scalar_lea.vmem %s1, %s190
      $region20: #{bottleneck_forward.1} parent=11 // pred_fallthru
        _
      // Predicated region
      $region21: #{bottleneck_forward.1} parent=11 // pred_check
        %p192 = pneg %p107
      $region22: #{bottleneck_forward.1} parent=11 // pred_check_branch
        %194 = sbr.rel (%p192) target = $region24
      $region23: #{bottleneck_forward.1} parent=11 // pred_region
        %p195 = scmp.lt.s32.totalorder %s20, 0
        %s196 = scalar_select %p195, %s20, 0
        %s197 = smul.addr %s196, 8
        %s198 = scalar_lea.vmem %s2, %s197
      $region24: #{bottleneck_forward.1} parent=11 // pred_fallthru
        _
      // Predicated region
      $region25: #{bottleneck_forward.1} parent=11 // pred_check
        %p199 = pneg %p133
      $region26: #{bottleneck_forward.1} parent=11 // pred_check_branch
        %201 = sbr.rel (%p199) target = $region28
      $region27: #{bottleneck_forward.1} parent=11 // pred_region
        %p202 = scmp.lt.s32.totalorder %s20, 0
        %s203 = scalar_select %p202, %s20, 0
        %s204 = smul.addr %s203, 8
        %s205 = scalar_lea.vmem %s3, %s204
      $region28: #{bottleneck_forward.1} parent=11 // pred_fallthru
        _
    $region12: #{bottleneck_forward.1} parent=5 // pred_fallthru
      _
    %p206 = scmp.lt.s32.totalorder %s10, 2
    // Predicated region
    $region29: #{bottleneck_forward.1} parent=5 // pred_check
      %p207 = pneg %p206
    $region30: #{bottleneck_forward.1} parent=5 // pred_check_branch
      %209 = sbr.rel (%p207) target = $region32
    $region31: #{bottleneck_forward.1} parent=5 // pred_region
      _
    $region32: #{bottleneck_forward.1} parent=5 // pred_fallthru
      _
    %p210 = scmp.le.s32.totalorder 1, %s10
    %p211 = scmp.lt.s32.totalorder %s10, 3
    %p212 = pnand %p210, %p211
    %p213 = pneg %p212
    // Predicated region
    $region33: #{bottleneck_forward.1} parent=5 // pred_check
      _
    $region34: #{bottleneck_forward.1} parent=5 // pred_check_branch
      %215 = sbr.rel (%p212) target = $region36
    $region35: #{bottleneck_forward.1} parent=5 // pred_region
      %s216 = ssub.s32 %s10, 1
      %p217 = scmp.lt.s32.totalorder %s22, 0
      %s218 = scalar_select %p217, %s22, 0
      %s219 = smul.addr %s218, 8
      %s220 = scalar_lea.vmem %s0, %s219
      %p221 = pneg %p55
      %p222 = pneg %p52
      %p223 = scmp.lt.s32.totalorder %s20, 0
      %s224 = scalar_select %p223, %s20, 0
      %s225 = smul.addr %s224, 8
      %s226 = scalar_lea.vmem %s1, %s225
      %p227 = pneg %p81
      %p228 = pneg %p78
      %p229 = scmp.lt.s32.totalorder %s20, 0
      %s230 = scalar_select %p229, %s20, 0
      %s231 = smul.addr %s230, 8
      %s232 = scalar_lea.vmem %s2, %s231
      %p233 = pneg %p107
      %p234 = pneg %p104
      %p235 = scmp.lt.s32.totalorder %s20, 0
      %s236 = scalar_select %p235, %s20, 0
      %s237 = smul.addr %s236, 8
      %s238 = scalar_lea.vmem %s3, %s237
      %p239 = pneg %p133
      %p240 = pneg %p130
      %p241 = pneg %p163
      %p242 = pneg %p160
      %s243 = smul.u32 %s22, %s21
      %p244 = scmp.lt.s32.totalorder %s20, 0
      %s245 = scalar_select %p244, %s20, 0
      %p246 = scmp.lt.s32.totalorder %s243, 0
      %s247 = scalar_select %p246, %s243, 0
      %s248 = sadd.s32 %s247, %s245
      %s249 = smul.addr %s248, 8
      %s250 = scalar_lea.vmem %s4, %s249
      %p251 = scmp.lt.s32.totalorder %s22, 0
      %s252 = scalar_select %p251, %s22, 0
      %s253 = smul.addr %s252, 8
      %s254 = scalar_lea.vmem %s0, %s253
      %p255 = scmp.lt.s32.totalorder %s20, 0
      %s256 = scalar_select %p255, %s20, 0
      %s257 = smul.addr %s256, 8
      %s258 = scalar_lea.vmem %s1, %s257
      %p259 = scmp.lt.s32.totalorder %s20, 0
      %s260 = scalar_select %p259, %s20, 0
      %s261 = smul.addr %s260, 8
      %s262 = scalar_lea.vmem %s2, %s261
      %p263 = scmp.lt.s32.totalorder %s20, 0
      %s264 = scalar_select %p263, %s20, 0
      %s265 = smul.addr %s264, 8
      %s266 = scalar_lea.vmem %s3, %s265
      %s267 = smul.u32 %s22, %s21
      %p268 = scmp.lt.s32.totalorder %s20, 0
      %s269 = scalar_select %p268, %s20, 0
      %p270 = scmp.lt.s32.totalorder %s267, 0
      %s271 = scalar_select %p270, %s267, 0
      %s272 = sadd.s32 %s271, %s269
      %s273 = smul.addr %s272, 8
      %s274 = scalar_lea.vmem %s4, %s273
      %s275 = smul.u32 %s22, %s21
      %v276 = vld [vmem:[%s258] sm:$0xff]
      %p277 = scmp.eq.s32.totalorder %s21, 0
      %p278 = scmp.eq.s32.totalorder %s22, 0
      %p279 = pnand %p277, %p278
      %p280 = pneg %p279
      // Predicated region
      $region37: #{bottleneck_forward.1} parent=35 // pred_check
        _
      $region38: #{bottleneck_forward.1} parent=35 // pred_check_branch
        %282 = sbr.rel (%p279) target = $region40
      $region39: #{bottleneck_forward.1} parent=35 // pred_region
        %vm283 = vcmask 7168
        %284 = vst.msk [vmem:[#allocation2] sm:$0xff] %vm283, 0.0
        %285 = vst.msk [vmem:[#allocation3] sm:$0xff] %vm283, 0.0
      $region40: #{bottleneck_forward.1} parent=35 // pred_fallthru
        _
      // Predicated region
      $region41: #{bottleneck_forward.1} parent=35 // pred_check
        %p286 = pneg %p277
      $region42: #{bottleneck_forward.1} parent=35 // pred_check_branch
        %288 = sbr.rel (%p286) target = $region44
      $region43: #{bottleneck_forward.1} parent=35 // pred_region
        %v289 = vld [vmem:[%s254] sm:$0xff]
        %v290 = vld [vmem:[%s254 + $0x8] sm:$0xff]
        %v291 = vld [vmem:[%s254 + $0x10] sm:$0xff]
        %v292 = vld [vmem:[%s254 + $0x18] sm:$0xff]
        %v293 = vld [vmem:[%s254 + $0x20] sm:$0xf]
        %vm294 = vcmask 293888
        %v296 = vsel %vm294, %v276, 0
        %vm298 = vcmask 1043456
        %v300 = vsel %vm298, %v293, 0
        %302 = vmatprep.subr.mxu0 0.0
        %303 = vmatpush1.msra.mxu0 %v289
        %304 = vmatprep.subr.mxu0 0.0
        %305 = vmatpush1.msra.mxu0 %v290
        %306 = vmatprep.subr.mxu0 0.0
        %307 = vmatpush1.msra.mxu0 %v291
        %308 = vmatprep.subr.mxu0 0.0
        %309 = vmatpush1.msra.mxu0 %v292
        %310 = vmatprep.subr.mxu0 0.0
        %311 = vmatpush1.msra.mxu0 %v300
        %312 = vmatprep.subr.mxu0 0.0
        %313 = vmatpush1.msra.mxu0 0.0
        %314 = vmatprep.subr.mxu0 0.0
        %315 = vmatpush1.msra.mxu0 0.0
        %316 = vmatprep.subr.mxu0 0.0
        %317 = vmatpush1.msra.mxu0 0.0
        %318 = vmatprep.subr.mxu0 0.0
        %319 = vmatpush1.msra.mxu0 0.0
        %320 = vmatprep.subr.mxu0 0.0
        %321 = vmatpush1.msra.mxu0 0.0
        %322 = vmatprep.subr.mxu0 0.0
        %323 = vmatpush1.msra.mxu0 0.0
        %324 = vmatprep.subr.mxu0 0.0
        %325 = vmatpush1.msra.mxu0 0.0
        %326 = vmatprep.subr.mxu0 0.0
        %327 = vmatpush1.msra.mxu0 0.0
        %328 = vmatprep.subr.mxu0 0.0
        %329 = vmatpush1.msra.mxu0 0.0
        %330 = vmatprep.subr.mxu0 0.0
        %331 = vmatpush1.msra.mxu0 0.0
        %332 = vmatprep.subr.mxu0 0.0
        %333 = vmatpush1.msra.mxu0 0.0
        %334 = vmatprep.subr.mxu0 0.0
        %335 = vmatpush1.msra.mxu0 0.0
        %336 = vmatprep.subr.mxu0 0.0
        %337 = vmatpush1.msra.mxu0 0.0
        %338 = vmatprep.subr.mxu0 0.0
        %339 = vmatpush1.msra.mxu0 0.0
        %340 = vmatprep.subr.mxu0 0.0
        %341 = vmatpush1.msra.mxu0 0.0
        %342 = vmatprep.subr.mxu0 0.0
        %343 = vmatpush1.msra.mxu0 0.0
        %344 = vmatprep.subr.mxu0 0.0
        %345 = vmatpush1.msra.mxu0 0.0
        %346 = vmatprep.subr.mxu0 0.0
        %347 = vmatpush1.msra.mxu0 0.0
        %348 = vmatprep.subr.mxu0 0.0
        %349 = vmatpush1.msra.mxu0 0.0
        %350 = vmatprep.subr.mxu0 0.0
        %351 = vmatpush1.msra.mxu0 0.0
        %352 = vmatprep.subr.mxu0 0.0
        %353 = vmatpush1.msra.mxu0 0.0
        %354 = vmatprep.subr.mxu0 0.0
        %355 = vmatpush1.msra.mxu0 0.0
        %356 = vmatprep.subr.mxu0 0.0
        %357 = vmatpush1.msra.mxu0 0.0
        %358 = vmatprep.subr.mxu0 0.0
        %359 = vmatpush1.msra.mxu0 0.0
        %360 = vmatprep.subr.mxu0 0.0
        %361 = vmatpush1.msra.mxu0 0.0
        %362 = vmatprep.subr.mxu0 0.0
        %363 = vmatpush1.msra.mxu0 0.0
        %364 = vmatprep.subr.mxu0 0.0
        %365 = vmatpush1.msra.mxu0 0.0
        %366 = vmatprep.mubr.f32.mxu0 0.0
        %367 = vmatmul.mubr.f32.gmra.mrb[0].mxu0 %v296
        %v368 = vpop.f32.mrb[0].mxu0
        %v369 = vadd.f32 0.0, %v368
        %v370 = vpop.f32.mrb[0].mxu0
        %371 = vdwg.mxu0
        %372 = vadd.xlane.f32.xlu0 %v369
        %v373 = vpop.xlane.xlu0 %372
        %v374 = vadd.f32 %v373, 0.0
        %v375 = vmul.f32 %v369, %v369
        %376 = vadd.xlane.f32.xlu0 %v375
        %v377 = vpop.xlane.xlu0 %376
        %v378 = vadd.f32 %v377, 0.0
        %s379 = scalar_lea.vmem %s254, 40
        %v380 = vld [vmem:[%s379] sm:$0xff]
        %v381 = vld [vmem:[%s379 + $0x8] sm:$0xff]
        %v382 = vld [vmem:[%s379 + $0x10] sm:$0xff]
        %v383 = vld [vmem:[%s379 + $0x18] sm:$0xff]
        %v384 = vld [vmem:[%s379 + $0x20] sm:$0xf]
        %v386 = vsel %vm298, %v384, 0
        %388 = vmatprep.subr.mxu0 0.0
        %389 = vmatpush1.msra.mxu0 %v380
        %390 = vmatprep.subr.mxu0 0.0
        %391 = vmatpush1.msra.mxu0 %v381
        %392 = vmatprep.subr.mxu0 0.0
        %393 = vmatpush1.msra.mxu0 %v382
        %394 = vmatprep.subr.mxu0 0.0
        %395 = vmatpush1.msra.mxu0 %v383
        %396 = vmatprep.subr.mxu0 0.0
        %397 = vmatpush1.msra.mxu0 %v386
        %398 = vmatprep.subr.mxu0 0.0
        %399 = vmatpush1.msra.mxu0 0.0
        %400 = vmatprep.subr.mxu0 0.0
        %401 = vmatpush1.msra.mxu0 0.0
        %402 = vmatprep.subr.mxu0 0.0
        %403 = vmatpush1.msra.mxu0 0.0
        %404 = vmatprep.subr.mxu0 0.0
        %405 = vmatpush1.msra.mxu0 0.0
        %406 = vmatprep.subr.mxu0 0.0
        %407 = vmatpush1.msra.mxu0 0.0
        %408 = vmatprep.subr.mxu0 0.0
        %409 = vmatpush1.msra.mxu0 0.0
        %410 = vmatprep.subr.mxu0 0.0
        %411 = vmatpush1.msra.mxu0 0.0
        %412 = vmatprep.subr.mxu0 0.0
        %413 = vmatpush1.msra.mxu0 0.0
        %414 = vmatprep.subr.mxu0 0.0
        %415 = vmatpush1.msra.mxu0 0.0
        %416 = vmatprep.subr.mxu0 0.0
        %417 = vmatpush1.msra.mxu0 0.0
        %418 = vmatprep.subr.mxu0 0.0
        %419 = vmatpush1.msra.mxu0 0.0
        %420 = vmatprep.subr.mxu0 0.0
        %421 = vmatpush1.msra.mxu0 0.0
        %422 = vmatprep.subr.mxu0 0.0
        %423 = vmatpush1.msra.mxu0 0.0
        %424 = vmatprep.subr.mxu0 0.0
        %425 = vmatpush1.msra.mxu0 0.0
        %426 = vmatprep.subr.mxu0 0.0
        %427 = vmatpush1.msra.mxu0 0.0
        %428 = vmatprep.subr.mxu0 0.0
        %429 = vmatpush1.msra.mxu0 0.0
        %430 = vmatprep.subr.mxu0 0.0
        %431 = vmatpush1.msra.mxu0 0.0
        %432 = vmatprep.subr.mxu0 0.0
        %433 = vmatpush1.msra.mxu0 0.0
        %434 = vmatprep.subr.mxu0 0.0
        %435 = vmatpush1.msra.mxu0 0.0
        %436 = vmatprep.subr.mxu0 0.0
        %437 = vmatpush1.msra.mxu0 0.0
        %438 = vmatprep.subr.mxu0 0.0
        %439 = vmatpush1.msra.mxu0 0.0
        %440 = vmatprep.subr.mxu0 0.0
        %441 = vmatpush1.msra.mxu0 0.0
        %442 = vmatprep.subr.mxu0 0.0
        %443 = vmatpush1.msra.mxu0 0.0
        %444 = vmatprep.subr.mxu0 0.0
        %445 = vmatpush1.msra.mxu0 0.0
        %446 = vmatprep.subr.mxu0 0.0
        %447 = vmatpush1.msra.mxu0 0.0
        %448 = vmatprep.subr.mxu0 0.0
        %449 = vmatpush1.msra.mxu0 0.0
        %450 = vmatprep.subr.mxu0 0.0
        %451 = vmatpush1.msra.mxu0 0.0
        %452 = vmatprep.mubr.f32.mxu0 0.0
        %453 = vmatmul.mubr.f32.gmra.mrb[0].mxu0 %v296
        %v454 = vpop.f32.mrb[0].mxu0
        %v455 = vadd.f32 0.0, %v454
        %v456 = vpop.f32.mrb[0].mxu0
        %457 = vdwg.mxu0
        %458 = vadd.xlane.f32.xlu0 %v455
        %v459 = vpop.xlane.xlu0 %458
        %v460 = vadd.f32 %v374, %v459
        %v461 = vmul.f32 %v455, %v455
        %462 = vadd.xlane.f32.xlu0 %v461
        %v463 = vpop.xlane.xlu0 %462
        %v464 = vadd.f32 %v378, %v463
        %s465 = scalar_lea.vmem %s254, 80
        %v466 = vld [vmem:[%s465] sm:$0xff]
        %v467 = vld [vmem:[%s465 + $0x8] sm:$0xff]
        %v468 = vld [vmem:[%s465 + $0x10] sm:$0xff]
        %v469 = vld [vmem:[%s465 + $0x18] sm:$0xff]
        %v470 = vld [vmem:[%s465 + $0x20] sm:$0xf]
        %v472 = vsel %vm298, %v470, 0
        %474 = vmatprep.subr.mxu0 0.0
        %475 = vmatpush1.msra.mxu0 %v466
        %476 = vmatprep.subr.mxu0 0.0
        %477 = vmatpush1.msra.mxu0 %v467
        %478 = vmatprep.subr.mxu0 0.0
        %479 = vmatpush1.msra.mxu0 %v468
        %480 = vmatprep.subr.mxu0 0.0
        %481 = vmatpush1.msra.mxu0 %v469
        %482 = vmatprep.subr.mxu0 0.0
        %483 = vmatpush1.msra.mxu0 %v472
        %484 = vmatprep.subr.mxu0 0.0
        %485 = vmatpush1.msra.mxu0 0.0
        %486 = vmatprep.subr.mxu0 0.0
        %487 = vmatpush1.msra.mxu0 0.0
        %488 = vmatprep.subr.mxu0 0.0
        %489 = vmatpush1.msra.mxu0 0.0
        %490 = vmatprep.subr.mxu0 0.0
        %491 = vmatpush1.msra.mxu0 0.0
        %492 = vmatprep.subr.mxu0 0.0
        %493 = vmatpush1.msra.mxu0 0.0
        %494 = vmatprep.subr.mxu0 0.0
        %495 = vmatpush1.msra.mxu0 0.0
        %496 = vmatprep.subr.mxu0 0.0
        %497 = vmatpush1.msra.mxu0 0.0
        %498 = vmatprep.subr.mxu0 0.0
        %499 = vmatpush1.msra.mxu0 0.0
        %500 = vmatprep.subr.mxu0 0.0
        %501 = vmatpush1.msra.mxu0 0.0
        %502 = vmatprep.subr.mxu0 0.0
        %503 = vmatpush1.msra.mxu0 0.0
        %504 = vmatprep.subr.mxu0 0.0
        %505 = vmatpush1.msra.mxu0 0.0
        %506 = vmatprep.subr.mxu0 0.0
        %507 = vmatpush1.msra.mxu0 0.0
        %508 = vmatprep.subr.mxu0 0.0
        %509 = vmatpush1.msra.mxu0 0.0
        %510 = vmatprep.subr.mxu0 0.0
        %511 = vmatpush1.msra.mxu0 0.0
        %512 = vmatprep.subr.mxu0 0.0
        %513 = vmatpush1.msra.mxu0 0.0
        %514 = vmatprep.subr.mxu0 0.0
        %515 = vmatpush1.msra.mxu0 0.0
        %516 = vmatprep.subr.mxu0 0.0
        %517 = vmatpush1.msra.mxu0 0.0
        %518 = vmatprep.subr.mxu0 0.0
        %519 = vmatpush1.msra.mxu0 0.0
        %520 = vmatprep.subr.mxu0 0.0
        %521 = vmatpush1.msra.mxu0 0.0
        %522 = vmatprep.subr.mxu0 0.0
        %523 = vmatpush1.msra.mxu0 0.0
        %524 = vmatprep.subr.mxu0 0.0
        %525 = vmatpush1.msra.mxu0 0.0
        %526 = vmatprep.subr.mxu0 0.0
        %527 = vmatpush1.msra.mxu0 0.0
        %528 = vmatprep.subr.mxu0 0.0
        %529 = vmatpush1.msra.mxu0 0.0
        %530 = vmatprep.subr.mxu0 0.0
        %531 = vmatpush1.msra.mxu0 0.0
        %532 = vmatprep.subr.mxu0 0.0
        %533 = vmatpush1.msra.mxu0 0.0
        %534 = vmatprep.subr.mxu0 0.0
        %535 = vmatpush1.msra.mxu0 0.0
        %536 = vmatprep.subr.mxu0 0.0
        %537 = vmatpush1.msra.mxu0 0.0
        %538 = vmatprep.mubr.f32.mxu0 0.0
        %539 = vmatmul.mubr.f32.gmra.mrb[0].mxu0 %v296
        %v540 = vpop.f32.mrb[0].mxu0
        %v541 = vadd.f32 0.0, %v540
        %v542 = vpop.f32.mrb[0].mxu0
        %543 = vdwg.mxu0
        %544 = vadd.xlane.f32.xlu0 %v541
        %v545 = vpop.xlane.xlu0 %544
        %v546 = vadd.f32 %v460, %v545
        %v547 = vmul.f32 %v541, %v541
        %548 = vadd.xlane.f32.xlu0 %v547
        %v549 = vpop.xlane.xlu0 %548
        %v550 = vadd.f32 %v464, %v549
        %s551 = scalar_lea.vmem %s254, 120
        %v552 = vld [vmem:[%s551] sm:$0xff]
        %v553 = vld [vmem:[%s551 + $0x8] sm:$0xff]
        %v554 = vld [vmem:[%s551 + $0x10] sm:$0xff]
        %v555 = vld [vmem:[%s551 + $0x18] sm:$0xff]
        %v556 = vld [vmem:[%s551 + $0x20] sm:$0xf]
        %v558 = vsel %vm298, %v556, 0
        %560 = vmatprep.subr.mxu0 0.0
        %561 = vmatpush1.msra.mxu0 %v552
        %562 = vmatprep.subr.mxu0 0.0
        %563 = vmatpush1.msra.mxu0 %v553
        %564 = vmatprep.subr.mxu0 0.0
        %565 = vmatpush1.msra.mxu0 %v554
        %566 = vmatprep.subr.mxu0 0.0
        %567 = vmatpush1.msra.mxu0 %v555
        %568 = vmatprep.subr.mxu0 0.0
        %569 = vmatpush1.msra.mxu0 %v558
        %570 = vmatprep.subr.mxu0 0.0
        %571 = vmatpush1.msra.mxu0 0.0
        %572 = vmatprep.subr.mxu0 0.0
        %573 = vmatpush1.msra.mxu0 0.0
        %574 = vmatprep.subr.mxu0 0.0
        %575 = vmatpush1.msra.mxu0 0.0
        %576 = vmatprep.subr.mxu0 0.0
        %577 = vmatpush1.msra.mxu0 0.0
        %578 = vmatprep.subr.mxu0 0.0
        %579 = vmatpush1.msra.mxu0 0.0
        %580 = vmatprep.subr.mxu0 0.0
        %581 = vmatpush1.msra.mxu0 0.0
        %582 = vmatprep.subr.mxu0 0.0
        %583 = vmatpush1.msra.mxu0 0.0
        %584 = vmatprep.subr.mxu0 0.0
        %585 = vmatpush1.msra.mxu0 0.0
        %586 = vmatprep.subr.mxu0 0.0
        %587 = vmatpush1.msra.mxu0 0.0
        %588 = vmatprep.subr.mxu0 0.0
        %589 = vmatpush1.msra.mxu0 0.0
        %590 = vmatprep.subr.mxu0 0.0
        %591 = vmatpush1.msra.mxu0 0.0
        %592 = vmatprep.subr.mxu0 0.0
        %593 = vmatpush1.msra.mxu0 0.0
        %594 = vmatprep.subr.mxu0 0.0
        %595 = vmatpush1.msra.mxu0 0.0
        %596 = vmatprep.subr.mxu0 0.0
        %597 = vmatpush1.msra.mxu0 0.0
        %598 = vmatprep.subr.mxu0 0.0
        %599 = vmatpush1.msra.mxu0 0.0
        %600 = vmatprep.subr.mxu0 0.0
        %601 = vmatpush1.msra.mxu0 0.0
        %602 = vmatprep.subr.mxu0 0.0
        %603 = vmatpush1.msra.mxu0 0.0
        %604 = vmatprep.subr.mxu0 0.0
        %605 = vmatpush1.msra.mxu0 0.0
        %606 = vmatprep.subr.mxu0 0.0
        %607 = vmatpush1.msra.mxu0 0.0
        %608 = vmatprep.subr.mxu0 0.0
        %609 = vmatpush1.msra.mxu0 0.0
        %610 = vmatprep.subr.mxu0 0.0
        %611 = vmatpush1.msra.mxu0 0.0
        %612 = vmatprep.subr.mxu0 0.0
        %613 = vmatpush1.msra.mxu0 0.0
        %614 = vmatprep.subr.mxu0 0.0
        %615 = vmatpush1.msra.mxu0 0.0
        %616 = vmatprep.subr.mxu0 0.0
        %617 = vmatpush1.msra.mxu0 0.0
        %618 = vmatprep.subr.mxu0 0.0
        %619 = vmatpush1.msra.mxu0 0.0
        %620 = vmatprep.subr.mxu0 0.0
        %621 = vmatpush1.msra.mxu0 0.0
        %622 = vmatprep.subr.mxu0 0.0
        %623 = vmatpush1.msra.mxu0 0.0
        %624 = vmatprep.mubr.f32.mxu0 0.0
        %625 = vmatmul.mubr.f32.gmra.mrb[0].mxu0 %v296
        %v626 = vpop.f32.mrb[0].mxu0
        %v627 = vadd.f32 0.0, %v626
        %v628 = vpop.f32.mrb[0].mxu0
        %629 = vdwg.mxu0
        %630 = vadd.xlane.f32.xlu0 %v627
        %v631 = vpop.xlane.xlu0 %630
        %v632 = vadd.f32 %v546, %v631
        %v633 = vmul.f32 %v627, %v627
        %634 = vadd.xlane.f32.xlu0 %v633
        %v635 = vpop.xlane.xlu0 %634
        %v636 = vadd.f32 %v550, %v635
        %v637 = vld [vmem:[#allocation2] sm:$0xff]
        %v638 = vadd.f32 %v637, %v632
        %vm639 = vcmask 7168
        %640 = vst.msk [vmem:[#allocation2] sm:$0xff] %vm639, %v638
        %v641 = vld [vmem:[#allocation3] sm:$0xff]
        %v642 = vadd.f32 %v641, %v636
        %643 = vst.msk [vmem:[#allocation3] sm:$0xff] %vm639, %v642
      $region44: #{bottleneck_forward.1} parent=35 // pred_fallthru
        _
      %p644 = scmp.eq.s32.totalorder %s21, 1
      // Predicated region
      $region45: #{bottleneck_forward.1} parent=35 // pred_check
        %p645 = pneg %p644
      $region46: #{bottleneck_forward.1} parent=35 // pred_check_branch
        %647 = sbr.rel (%p645) target = $region48
      $region47: #{bottleneck_forward.1} parent=35 // pred_region
        %v648 = vld [vmem:[#allocation2] sm:$0xff]
        %v649 = vmul.f32 %v648, 0.001953125
        %v650 = vld [vmem:[#allocation3] sm:$0xff]
        %v651 = vmul.f32 %v650, 0.001953125
        %v652 = vmul.f32 %v649, %v649
        %v653 = vsub.f32 %v651, %v652
        %v654 = vmax.f32 %v653, 0.0
        %v655 = vld [vmem:[%s266] sm:$0xff]
        %v656 = vadd.f32 %v654, 1e-05
        %v657 = vrsqrt.pop %v656
        %v658 = vmul.f32 %v655, %v657
        %v659 = vmul.f32 %v649, %v658
        %661 = vrot.lane.b32.xlu0 %v659, 1
        %v662 = vpop.permute.xlu0 %661
        %v664 = vsub.f32 %v655, %v662
        %666 = vrot.lane.b32.xlu0 %v655, 127
        %v667 = vpop.permute.xlu0 %666
        %v669 = vadd.f32 %v664, %v667
        %v670 = vld [vmem:[%s262] sm:$0xff]
        %v671 = vld [vmem:[%s254] sm:$0xff]
        %v672 = vld [vmem:[%s254 + $0x8] sm:$0xff]
        %v673 = vld [vmem:[%s254 + $0x10] sm:$0xff]
        %v674 = vld [vmem:[%s254 + $0x18] sm:$0xff]
        %v675 = vld [vmem:[%s254 + $0x20] sm:$0xf]
        %vm676 = vcmask 293888
        %v678 = vsel %vm676, %v276, 0
        %vm680 = vcmask 1043456
        %v682 = vsel %vm680, %v675, 0
        %684 = vmatprep.subr.mxu0 0.0
        %685 = vmatpush1.msra.mxu0 %v671
        %686 = vmatprep.subr.mxu0 0.0
        %687 = vmatpush1.msra.mxu0 %v672
        %688 = vmatprep.subr.mxu0 0.0
        %689 = vmatpush1.msra.mxu0 %v673
        %690 = vmatprep.subr.mxu0 0.0
        %691 = vmatpush1.msra.mxu0 %v674
        %692 = vmatprep.subr.mxu0 0.0
        %693 = vmatpush1.msra.mxu0 %v682
        %694 = vmatprep.subr.mxu0 0.0
        %695 = vmatpush1.msra.mxu0 0.0
        %696 = vmatprep.subr.mxu0 0.0
        %697 = vmatpush1.msra.mxu0 0.0
        %698 = vmatprep.subr.mxu0 0.0
        %699 = vmatpush1.msra.mxu0 0.0
        %700 = vmatprep.subr.mxu0 0.0
        %701 = vmatpush1.msra.mxu0 0.0
        %702 = vmatprep.subr.mxu0 0.0
        %703 = vmatpush1.msra.mxu0 0.0
        %704 = vmatprep.subr.mxu0 0.0
        %705 = vmatpush1.msra.mxu0 0.0
        %706 = vmatprep.subr.mxu0 0.0
        %707 = vmatpush1.msra.mxu0 0.0
        %708 = vmatprep.subr.mxu0 0.0
        %709 = vmatpush1.msra.mxu0 0.0
        %710 = vmatprep.subr.mxu0 0.0
        %711 = vmatpush1.msra.mxu0 0.0
        %712 = vmatprep.subr.mxu0 0.0
        %713 = vmatpush1.msra.mxu0 0.0
        %714 = vmatprep.subr.mxu0 0.0
        %715 = vmatpush1.msra.mxu0 0.0
        %716 = vmatprep.subr.mxu0 0.0
        %717 = vmatpush1.msra.mxu0 0.0
        %718 = vmatprep.subr.mxu0 0.0
        %719 = vmatpush1.msra.mxu0 0.0
        %720 = vmatprep.subr.mxu0 0.0
        %721 = vmatpush1.msra.mxu0 0.0
        %722 = vmatprep.subr.mxu0 0.0
        %723 = vmatpush1.msra.mxu0 0.0
        %724 = vmatprep.subr.mxu0 0.0
        %725 = vmatpush1.msra.mxu0 0.0
        %726 = vmatprep.subr.mxu0 0.0
        %727 = vmatpush1.msra.mxu0 0.0
        %728 = vmatprep.subr.mxu0 0.0
        %729 = vmatpush1.msra.mxu0 0.0
        %730 = vmatprep.subr.mxu0 0.0
        %731 = vmatpush1.msra.mxu0 0.0
        %732 = vmatprep.subr.mxu0 0.0
        %733 = vmatpush1.msra.mxu0 0.0
        %734 = vmatprep.subr.mxu0 0.0
        %735 = vmatpush1.msra.mxu0 0.0
        %736 = vmatprep.subr.mxu0 0.0
        %737 = vmatpush1.msra.mxu0 0.0
        %738 = vmatprep.subr.mxu0 0.0
        %739 = vmatpush1.msra.mxu0 0.0
        %740 = vmatprep.subr.mxu0 0.0
        %741 = vmatpush1.msra.mxu0 0.0
        %742 = vmatprep.subr.mxu0 0.0
        %743 = vmatpush1.msra.mxu0 0.0
        %744 = vmatprep.subr.mxu0 0.0
        %745 = vmatpush1.msra.mxu0 0.0
        %746 = vmatprep.subr.mxu0 0.0
        %747 = vmatpush1.msra.mxu0 0.0
        %748 = vmatprep.mubr.f32.mxu0 0.0
        %749 = vmatmul.mubr.f32.gmra.mrb[0].mxu0 %v678
        %v750 = vpop.f32.mrb[0].mxu0
        %v751 = vadd.f32 0.0, %v750
        %v752 = vpop.f32.mrb[0].mxu0
        %753 = vdwg.mxu0
        %vm754 = vcmask 31744
        %v756 = vsel %vm754, %v670, 0
        %v759 = vsel %vm680, %v671, 0
        %761 = vmatprep.subr.mxu0 0.0
        %762 = vmatpush1.msra.mxu0 %v759
        %763 = vmatprep.subr.mxu0 0.0
        %764 = vmatpush1.msra.mxu0 0.0
        %765 = vmatprep.subr.mxu0 0.0
        %766 = vmatpush1.msra.mxu0 0.0
        %767 = vmatprep.subr.mxu0 0.0
        %768 = vmatpush1.msra.mxu0 0.0
        %769 = vmatprep.subr.mxu0 0.0
        %770 = vmatpush1.msra.mxu0 0.0
        %771 = vmatprep.subr.mxu0 0.0
        %772 = vmatpush1.msra.mxu0 0.0
        %773 = vmatprep.subr.mxu0 0.0
        %774 = vmatpush1.msra.mxu0 0.0
        %775 = vmatprep.subr.mxu0 0.0
        %776 = vmatpush1.msra.mxu0 0.0
        %777 = vmatprep.subr.mxu0 0.0
        %778 = vmatpush1.msra.mxu0 0.0
        %779 = vmatprep.subr.mxu0 0.0
        %780 = vmatpush1.msra.mxu0 0.0
        %781 = vmatprep.subr.mxu0 0.0
        %782 = vmatpush1.msra.mxu0 0.0
        %783 = vmatprep.subr.mxu0 0.0
        %784 = vmatpush1.msra.mxu0 0.0
        %785 = vmatprep.subr.mxu0 0.0
        %786 = vmatpush1.msra.mxu0 0.0
        %787 = vmatprep.subr.mxu0 0.0
        %788 = vmatpush1.msra.mxu0 0.0
        %789 = vmatprep.subr.mxu0 0.0
        %790 = vmatpush1.msra.mxu0 0.0
        %791 = vmatprep.subr.mxu0 0.0
        %792 = vmatpush1.msra.mxu0 0.0
        %793 = vmatprep.subr.mxu0 0.0
        %794 = vmatpush1.msra.mxu0 0.0
        %795 = vmatprep.subr.mxu0 0.0
        %796 = vmatpush1.msra.mxu0 0.0
        %797 = vmatprep.subr.mxu0 0.0
        %798 = vmatpush1.msra.mxu0 0.0
        %799 = vmatprep.subr.mxu0 0.0
        %800 = vmatpush1.msra.mxu0 0.0
        %801 = vmatprep.subr.mxu0 0.0
        %802 = vmatpush1.msra.mxu0 0.0
        %803 = vmatprep.subr.mxu0 0.0
        %804 = vmatpush1.msra.mxu0 0.0
        %805 = vmatprep.subr.mxu0 0.0
        %806 = vmatpush1.msra.mxu0 0.0
        %807 = vmatprep.subr.mxu0 0.0
        %808 = vmatpush1.msra.mxu0 0.0
        %809 = vmatprep.subr.mxu0 0.0
        %810 = vmatpush1.msra.mxu0 0.0
        %811 = vmatprep.subr.mxu0 0.0
        %812 = vmatpush1.msra.mxu0 0.0
        %813 = vmatprep.subr.mxu0 0.0
        %814 = vmatpush1.msra.mxu0 0.0
        %815 = vmatprep.subr.mxu0 0.0
        %816 = vmatpush1.msra.mxu0 0.0
        %817 = vmatprep.subr.mxu0 0.0
        %818 = vmatpush1.msra.mxu0 0.0
        %819 = vmatprep.subr.mxu0 0.0
        %820 = vmatpush1.msra.mxu0 0.0
        %821 = vmatprep.subr.mxu0 0.0
        %822 = vmatpush1.msra.mxu0 0.0
        %823 = vmatprep.subr.mxu0 0.0
        %824 = vmatpush1.msra.mxu0 0.0
        %825 = vmatprep.mubr.f32.mxu0 0.0
        %826 = vmatmul.mubr.f32.gmra.mrb[0].mxu0 %v756
        %v827 = vpop.f32.mrb[0].mxu0
        %v828 = vadd.f32 0.0, %v827
        %v829 = vpop.f32.mrb[0].mxu0
        %830 = vdwg.mxu0
        %832 = vset.pattern.permute.xlu0 0
        %833 = vperm.xlu0 %832, %v658
        %v834 = vpop.permute.xlu0 %833
        %v836 = vmul.f32 %v751, %v834
        %v837 = vadd.f32 %v836, %v828
        %839 = vset.pattern.permute.xlu0 1
        %840 = vperm.xlu0 %839, %v669
        %v841 = vpop.permute.xlu0 %840
        %v843 = vadd.f32 %v837, %v841
        %v844 = vmax.f32 %v843, 0.0
        %s845 = scalar_lea.vmem %s254, 40
        %v846 = vld [vmem:[%s845] sm:$0xff]
        %v847 = vld [vmem:[%s845 + $0x8] sm:$0xff]
        %v848 = vld [vmem:[%s845 + $0x10] sm:$0xff]
        %v849 = vld [vmem:[%s845 + $0x18] sm:$0xff]
        %v850 = vld [vmem:[%s845 + $0x20] sm:$0xf]
        %v852 = vsel %vm680, %v850, 0
        %854 = vmatprep.subr.mxu0 0.0
        %855 = vmatpush1.msra.mxu0 %v846
        %856 = vmatprep.subr.mxu0 0.0
        %857 = vmatpush1.msra.mxu0 %v847
        %858 = vmatprep.subr.mxu0 0.0
        %859 = vmatpush1.msra.mxu0 %v848
        %860 = vmatprep.subr.mxu0 0.0
        %861 = vmatpush1.msra.mxu0 %v849
        %862 = vmatprep.subr.mxu0 0.0
        %863 = vmatpush1.msra.mxu0 %v852
        %864 = vmatprep.subr.mxu0 0.0
        %865 = vmatpush1.msra.mxu0 0.0
        %866 = vmatprep.subr.mxu0 0.0
        %867 = vmatpush1.msra.mxu0 0.0
        %868 = vmatprep.subr.mxu0 0.0
        %869 = vmatpush1.msra.mxu0 0.0
        %870 = vmatprep.subr.mxu0 0.0
        %871 = vmatpush1.msra.mxu0 0.0
        %872 = vmatprep.subr.mxu0 0.0
        %873 = vmatpush1.msra.mxu0 0.0
        %874 = vmatprep.subr.mxu0 0.0
        %875 = vmatpush1.msra.mxu0 0.0
        %876 = vmatprep.subr.mxu0 0.0
        %877 = vmatpush1.msra.mxu0 0.0
        %878 = vmatprep.subr.mxu0 0.0
        %879 = vmatpush1.msra.mxu0 0.0
        %880 = vmatprep.subr.mxu0 0.0
        %881 = vmatpush1.msra.mxu0 0.0
        %882 = vmatprep.subr.mxu0 0.0
        %883 = vmatpush1.msra.mxu0 0.0
        %884 = vmatprep.subr.mxu0 0.0
        %885 = vmatpush1.msra.mxu0 0.0
        %886 = vmatprep.subr.mxu0 0.0
        %887 = vmatpush1.msra.mxu0 0.0
        %888 = vmatprep.subr.mxu0 0.0
        %889 = vmatpush1.msra.mxu0 0.0
        %890 = vmatprep.subr.mxu0 0.0
        %891 = vmatpush1.msra.mxu0 0.0
        %892 = vmatprep.subr.mxu0 0.0
        %893 = vmatpush1.msra.mxu0 0.0
        %894 = vmatprep.subr.mxu0 0.0
        %895 = vmatpush1.msra.mxu0 0.0
        %896 = vmatprep.subr.mxu0 0.0
        %897 = vmatpush1.msra.mxu0 0.0
        %898 = vmatprep.subr.mxu0 0.0
        %899 = vmatpush1.msra.mxu0 0.0
        %900 = vmatprep.subr.mxu0 0.0
        %901 = vmatpush1.msra.mxu0 0.0
        %902 = vmatprep.subr.mxu0 0.0
        %903 = vmatpush1.msra.mxu0 0.0
        %904 = vmatprep.subr.mxu0 0.0
        %905 = vmatpush1.msra.mxu0 0.0
        %906 = vmatprep.subr.mxu0 0.0
        %907 = vmatpush1.msra.mxu0 0.0
        %908 = vmatprep.subr.mxu0 0.0
        %909 = vmatpush1.msra.mxu0 0.0
        %910 = vmatprep.subr.mxu0 0.0
        %911 = vmatpush1.msra.mxu0 0.0
        %912 = vmatprep.subr.mxu0 0.0
        %913 = vmatpush1.msra.mxu0 0.0
        %914 = vmatprep.subr.mxu0 0.0
        %915 = vmatpush1.msra.mxu0 0.0
        %916 = vmatprep.subr.mxu0 0.0
        %917 = vmatpush1.msra.mxu0 0.0
        %918 = vmatprep.mubr.f32.mxu0 0.0
        %919 = vmatmul.mubr.f32.gmra.mrb[0].mxu0 %v678
        %v920 = vpop.f32.mrb[0].mxu0
        %v921 = vadd.f32 0.0, %v920
        %v922 = vpop.f32.mrb[0].mxu0
        %923 = vdwg.mxu0
        %v925 = vsel %vm680, %v846, 0
        %927 = vmatprep.subr.mxu0 0.0
        %928 = vmatpush1.msra.mxu0 %v925
        %929 = vmatprep.subr.mxu0 0.0
        %930 = vmatpush1.msra.mxu0 0.0
        %931 = vmatprep.subr.mxu0 0.0
        %932 = vmatpush1.msra.mxu0 0.0
        %933 = vmatprep.subr.mxu0 0.0
        %934 = vmatpush1.msra.mxu0 0.0
        %935 = vmatprep.subr.mxu0 0.0
        %936 = vmatpush1.msra.mxu0 0.0
        %937 = vmatprep.subr.mxu0 0.0
        %938 = vmatpush1.msra.mxu0 0.0
        %939 = vmatprep.subr.mxu0 0.0
        %940 = vmatpush1.msra.mxu0 0.0
        %941 = vmatprep.subr.mxu0 0.0
        %942 = vmatpush1.msra.mxu0 0.0
        %943 = vmatprep.subr.mxu0 0.0
        %944 = vmatpush1.msra.mxu0 0.0
        %945 = vmatprep.subr.mxu0 0.0
        %946 = vmatpush1.msra.mxu0 0.0
        %947 = vmatprep.subr.mxu0 0.0
        %948 = vmatpush1.msra.mxu0 0.0
        %949 = vmatprep.subr.mxu0 0.0
        %950 = vmatpush1.msra.mxu0 0.0
        %951 = vmatprep.subr.mxu0 0.0
        %952 = vmatpush1.msra.mxu0 0.0
        %953 = vmatprep.subr.mxu0 0.0
        %954 = vmatpush1.msra.mxu0 0.0
        %955 = vmatprep.subr.mxu0 0.0
        %956 = vmatpush1.msra.mxu0 0.0
        %957 = vmatprep.subr.mxu0 0.0
        %958 = vmatpush1.msra.mxu0 0.0
        %959 = vmatprep.subr.mxu0 0.0
        %960 = vmatpush1.msra.mxu0 0.0
        %961 = vmatprep.subr.mxu0 0.0
        %962 = vmatpush1.msra.mxu0 0.0
        %963 = vmatprep.subr.mxu0 0.0
        %964 = vmatpush1.msra.mxu0 0.0
        %965 = vmatprep.subr.mxu0 0.0
        %966 = vmatpush1.msra.mxu0 0.0
        %967 = vmatprep.subr.mxu0 0.0
        %968 = vmatpush1.msra.mxu0 0.0
        %969 = vmatprep.subr.mxu0 0.0
        %970 = vmatpush1.msra.mxu0 0.0
        %971 = vmatprep.subr.mxu0 0.0
        %972 = vmatpush1.msra.mxu0 0.0
        %973 = vmatprep.subr.mxu0 0.0
        %974 = vmatpush1.msra.mxu0 0.0
        %975 = vmatprep.subr.mxu0 0.0
        %976 = vmatpush1.msra.mxu0 0.0
        %977 = vmatprep.subr.mxu0 0.0
        %978 = vmatpush1.msra.mxu0 0.0
        %979 = vmatprep.subr.mxu0 0.0
        %980 = vmatpush1.msra.mxu0 0.0
        %981 = vmatprep.subr.mxu0 0.0
        %982 = vmatpush1.msra.mxu0 0.0
        %983 = vmatprep.subr.mxu0 0.0
        %984 = vmatpush1.msra.mxu0 0.0
        %985 = vmatprep.subr.mxu0 0.0
        %986 = vmatpush1.msra.mxu0 0.0
        %987 = vmatprep.subr.mxu0 0.0
        %988 = vmatpush1.msra.mxu0 0.0
        %989 = vmatprep.subr.mxu0 0.0
        %990 = vmatpush1.msra.mxu0 0.0
        %991 = vmatprep.mubr.f32.mxu0 0.0
        %992 = vmatmul.mubr.f32.gmra.mrb[0].mxu0 %v756
        %v993 = vpop.f32.mrb[0].mxu0
        %v994 = vadd.f32 0.0, %v993
        %v995 = vpop.f32.mrb[0].mxu0
        %996 = vdwg.mxu0
        %v997 = vmul.f32 %v921, %v834
        %v998 = vadd.f32 %v997, %v994
        %v999 = vadd.f32 %v998, %v841
        %v1000 = vmax.f32 %v999, 0.0
        %v1001 = vmax.f32 %v844, %v1000
        %s1002 = scalar_lea.vmem %s254, 80
        %v1003 = vld [vmem:[%s1002] sm:$0xff]
        %v1004 = vld [vmem:[%s1002 + $0x8] sm:$0xff]
        %v1005 = vld [vmem:[%s1002 + $0x10] sm:$0xff]
        %v1006 = vld [vmem:[%s1002 + $0x18] sm:$0xff]
        %v1007 = vld [vmem:[%s1002 + $0x20] sm:$0xf]
        %v1009 = vsel %vm680, %v1007, 0
        %1011 = vmatprep.subr.mxu0 0.0
        %1012 = vmatpush1.msra.mxu0 %v1003
        %1013 = vmatprep.subr.mxu0 0.0
        %1014 = vmatpush1.msra.mxu0 %v1004
        %1015 = vmatprep.subr.mxu0 0.0
        %1016 = vmatpush1.msra.mxu0 %v1005
        %1017 = vmatprep.subr.mxu0 0.0
        %1018 = vmatpush1.msra.mxu0 %v1006
        %1019 = vmatprep.subr.mxu0 0.0
        %1020 = vmatpush1.msra.mxu0 %v1009
        %1021 = vmatprep.subr.mxu0 0.0
        %1022 = vmatpush1.msra.mxu0 0.0
        %1023 = vmatprep.subr.mxu0 0.0
        %1024 = vmatpush1.msra.mxu0 0.0
        %1025 = vmatprep.subr.mxu0 0.0
        %1026 = vmatpush1.msra.mxu0 0.0
        %1027 = vmatprep.subr.mxu0 0.0
        %1028 = vmatpush1.msra.mxu0 0.0
        %1029 = vmatprep.subr.mxu0 0.0
        %1030 = vmatpush1.msra.mxu0 0.0
        %1031 = vmatprep.subr.mxu0 0.0
        %1032 = vmatpush1.msra.mxu0 0.0
        %1033 = vmatprep.subr.mxu0 0.0
        %1034 = vmatpush1.msra.mxu0 0.0
        %1035 = vmatprep.subr.mxu0 0.0
        %1036 = vmatpush1.msra.mxu0 0.0
        %1037 = vmatprep.subr.mxu0 0.0
        %1038 = vmatpush1.msra.mxu0 0.0
        %1039 = vmatprep.subr.mxu0 0.0
        %1040 = vmatpush1.msra.mxu0 0.0
        %1041 = vmatprep.subr.mxu0 0.0
        %1042 = vmatpush1.msra.mxu0 0.0
        %1043 = vmatprep.subr.mxu0 0.0
        %1044 = vmatpush1.msra.mxu0 0.0
        %1045 = vmatprep.subr.mxu0 0.0
        %1046 = vmatpush1.msra.mxu0 0.0
        %1047 = vmatprep.subr.mxu0 0.0
        %1048 = vmatpush1.msra.mxu0 0.0
        %1049 = vmatprep.subr.mxu0 0.0
        %1050 = vmatpush1.msra.mxu0 0.0
        %1051 = vmatprep.subr.mxu0 0.0
        %1052 = vmatpush1.msra.mxu0 0.0
        %1053 = vmatprep.subr.mxu0 0.0
        %1054 = vmatpush1.msra.mxu0 0.0
        %1055 = vmatprep.subr.mxu0 0.0
        %1056 = vmatpush1.msra.mxu0 0.0
        %1057 = vmatprep.subr.mxu0 0.0
        %1058 = vmatpush1.msra.mxu0 0.0
        %1059 = vmatprep.subr.mxu0 0.0
        %1060 = vmatpush1.msra.mxu0 0.0
        %1061 = vmatprep.subr.mxu0 0.0
        %1062 = vmatpush1.msra.mxu0 0.0
        %1063 = vmatprep.subr.mxu0 0.0
        %1064 = vmatpush1.msra.mxu0 0.0
        %1065 = vmatprep.subr.mxu0 0.0
        %1066 = vmatpush1.msra.mxu0 0.0
        %1067 = vmatprep.subr.mxu0 0.0
        %1068 = vmatpush1.msra.mxu0 0.0
        %1069 = vmatprep.subr.mxu0 0.0
        %1070 = vmatpush1.msra.mxu0 0.0
        %1071 = vmatprep.subr.mxu0 0.0
        %1072 = vmatpush1.msra.mxu0 0.0
        %1073 = vmatprep.subr.mxu0 0.0
        %1074 = vmatpush1.msra.mxu0 0.0
        %1075 = vmatprep.mubr.f32.mxu0 0.0
        %1076 = vmatmul.mubr.f32.gmra.mrb[0].mxu0 %v678
        %v1077 = vpop.f32.mrb[0].mxu0
        %v1078 = vadd.f32 0.0, %v1077
        %v1079 = vpop.f32.mrb[0].mxu0
        %1080 = vdwg.mxu0
        %v1082 = vsel %vm680, %v1003, 0
        %1084 = vmatprep.subr.mxu0 0.0
        %1085 = vmatpush1.msra.mxu0 %v1082
        %1086 = vmatprep.subr.mxu0 0.0
        %1087 = vmatpush1.msra.mxu0 0.0
        %1088 = vmatprep.subr.mxu0 0.0
        %1089 = vmatpush1.msra.mxu0 0.0
        %1090 = vmatprep.subr.mxu0 0.0
        %1091 = vmatpush1.msra.mxu0 0.0
        %1092 = vmatprep.subr.mxu0 0.0
        %1093 = vmatpush1.msra.mxu0 0.0
        %1094 = vmatprep.subr.mxu0 0.0
        %1095 = vmatpush1.msra.mxu0 0.0
        %1096 = vmatprep.subr.mxu0 0.0
        %1097 = vmatpush1.msra.mxu0 0.0
        %1098 = vmatprep.subr.mxu0 0.0
        %1099 = vmatpush1.msra.mxu0 0.0
        %1100 = vmatprep.subr.mxu0 0.0
        %1101 = vmatpush1.msra.mxu0 0.0
        %1102 = vmatprep.subr.mxu0 0.0
        %1103 = vmatpush1.msra.mxu0 0.0
        %1104 = vmatprep.subr.mxu0 0.0
        %1105 = vmatpush1.msra.mxu0 0.0
        %1106 = vmatprep.subr.mxu0 0.0
        %1107 = vmatpush1.msra.mxu0 0.0
        %1108 = vmatprep.subr.mxu0 0.0
        %1109 = vmatpush1.msra.mxu0 0.0
        %1110 = vmatprep.subr.mxu0 0.0
        %1111 = vmatpush1.msra.mxu0 0.0
        %1112 = vmatprep.subr.mxu0 0.0
        %1113 = vmatpush1.msra.mxu0 0.0
        %1114 = vmatprep.subr.mxu0 0.0
        %1115 = vmatpush1.msra.mxu0 0.0
        %1116 = vmatprep.subr.mxu0 0.0
        %1117 = vmatpush1.msra.mxu0 0.0
        %1118 = vmatprep.subr.mxu0 0.0
        %1119 = vmatpush1.msra.mxu0 0.0
        %1120 = vmatprep.subr.mxu0 0.0
        %1121 = vmatpush1.msra.mxu0 0.0
        %1122 = vmatprep.subr.mxu0 0.0
        %1123 = vmatpush1.msra.mxu0 0.0
        %1124 = vmatprep.subr.mxu0 0.0
        %1125 = vmatpush1.msra.mxu0 0.0
        %1126 = vmatprep.subr.mxu0 0.0
        %1127 = vmatpush1.msra.mxu0 0.0
        %1128 = vmatprep.subr.mxu0 0.0
        %1129 = vmatpush1.msra.mxu0 0.0
        %1130 = vmatprep.subr.mxu0 0.0
        %1131 = vmatpush1.msra.mxu0 0.0
        %1132 = vmatprep.subr.mxu0 0.0
        %1133 = vmatpush1.msra.mxu0 0.0
        %1134 = vmatprep.subr.mxu0 0.0
        %1135 = vmatpush1.msra.mxu0 0.0
        %1136 = vmatprep.subr.mxu0 0.0
        %1137 = vmatpush1.msra.mxu0 0.0
        %1138 = vmatprep.subr.mxu0 0.0
        %1139 = vmatpush1.msra.mxu0 0.0
        %1140 = vmatprep.subr.mxu0 0.0
        %1141 = vmatpush1.msra.mxu0 0.0
        %1142 = vmatprep.subr.mxu0 0.0
        %1143 = vmatpush1.msra.mxu0 0.0
        %1144 = vmatprep.subr.mxu0 0.0
        %1145 = vmatpush1.msra.mxu0 0.0
        %1146 = vmatprep.subr.mxu0 0.0
        %1147 = vmatpush1.msra.mxu0 0.0
        %1148 = vmatprep.mubr.f32.mxu0 0.0
        %1149 = vmatmul.mubr.f32.gmra.mrb[0].mxu0 %v756
        %v1150 = vpop.f32.mrb[0].mxu0
        %v1151 = vadd.f32 0.0, %v1150
        %v1152 = vpop.f32.mrb[0].mxu0
        %1153 = vdwg.mxu0
        %v1154 = vmul.f32 %v1078, %v834
        %v1155 = vadd.f32 %v1154, %v1151
        %v1156 = vadd.f32 %v1155, %v841
        %v1157 = vmax.f32 %v1156, 0.0
        %v1158 = vmax.f32 %v1001, %v1157
        %s1159 = scalar_lea.vmem %s254, 120
        %v1160 = vld [vmem:[%s1159] sm:$0xff]
        %v1161 = vld [vmem:[%s1159 + $0x8] sm:$0xff]
        %v1162 = vld [vmem:[%s1159 + $0x10] sm:$0xff]
        %v1163 = vld [vmem:[%s1159 + $0x18] sm:$0xff]
        %v1164 = vld [vmem:[%s1159 + $0x20] sm:$0xf]
        %v1166 = vsel %vm680, %v1164, 0
        %1168 = vmatprep.subr.mxu0 0.0
        %1169 = vmatpush1.msra.mxu0 %v1160
        %1170 = vmatprep.subr.mxu0 0.0
        %1171 = vmatpush1.msra.mxu0 %v1161
        %1172 = vmatprep.subr.mxu0 0.0
        %1173 = vmatpush1.msra.mxu0 %v1162
        %1174 = vmatprep.subr.mxu0 0.0
        %1175 = vmatpush1.msra.mxu0 %v1163
        %1176 = vmatprep.subr.mxu0 0.0
        %1177 = vmatpush1.msra.mxu0 %v1166
        %1178 = vmatprep.subr.mxu0 0.0
        %1179 = vmatpush1.msra.mxu0 0.0
        %1180 = vmatprep.subr.mxu0 0.0
        %1181 = vmatpush1.msra.mxu0 0.0
        %1182 = vmatprep.subr.mxu0 0.0
        %1183 = vmatpush1.msra.mxu0 0.0
        %1184 = vmatprep.subr.mxu0 0.0
        %1185 = vmatpush1.msra.mxu0 0.0
        %1186 = vmatprep.subr.mxu0 0.0
        %1187 = vmatpush1.msra.mxu0 0.0
        %1188 = vmatprep.subr.mxu0 0.0
        %1189 = vmatpush1.msra.mxu0 0.0
        %1190 = vmatprep.subr.mxu0 0.0
        %1191 = vmatpush1.msra.mxu0 0.0
        %1192 = vmatprep.subr.mxu0 0.0
        %1193 = vmatpush1.msra.mxu0 0.0
        %1194 = vmatprep.subr.mxu0 0.0
        %1195 = vmatpush1.msra.mxu0 0.0
        %1196 = vmatprep.subr.mxu0 0.0
        %1197 = vmatpush1.msra.mxu0 0.0
        %1198 = vmatprep.subr.mxu0 0.0
        %1199 = vmatpush1.msra.mxu0 0.0
        %1200 = vmatprep.subr.mxu0 0.0
        %1201 = vmatpush1.msra.mxu0 0.0
        %1202 = vmatprep.subr.mxu0 0.0
        %1203 = vmatpush1.msra.mxu0 0.0
        %1204 = vmatprep.subr.mxu0 0.0
        %1205 = vmatpush1.msra.mxu0 0.0
        %1206 = vmatprep.subr.mxu0 0.0
        %1207 = vmatpush1.msra.mxu0 0.0
        %1208 = vmatprep.subr.mxu0 0.0
        %1209 = vmatpush1.msra.mxu0 0.0
        %1210 = vmatprep.subr.mxu0 0.0
        %1211 = vmatpush1.msra.mxu0 0.0
        %1212 = vmatprep.subr.mxu0 0.0
        %1213 = vmatpush1.msra.mxu0 0.0
        %1214 = vmatprep.subr.mxu0 0.0
        %1215 = vmatpush1.msra.mxu0 0.0
        %1216 = vmatprep.subr.mxu0 0.0
        %1217 = vmatpush1.msra.mxu0 0.0
        %1218 = vmatprep.subr.mxu0 0.0
        %1219 = vmatpush1.msra.mxu0 0.0
        %1220 = vmatprep.subr.mxu0 0.0
        %1221 = vmatpush1.msra.mxu0 0.0
        %1222 = vmatprep.subr.mxu0 0.0
        %1223 = vmatpush1.msra.mxu0 0.0
        %1224 = vmatprep.subr.mxu0 0.0
        %1225 = vmatpush1.msra.mxu0 0.0
        %1226 = vmatprep.subr.mxu0 0.0
        %1227 = vmatpush1.msra.mxu0 0.0
        %1228 = vmatprep.subr.mxu0 0.0
        %1229 = vmatpush1.msra.mxu0 0.0
        %1230 = vmatprep.subr.mxu0 0.0
        %1231 = vmatpush1.msra.mxu0 0.0
        %1232 = vmatprep.mubr.f32.mxu0 0.0
        %1233 = vmatmul.mubr.f32.gmra.mrb[0].mxu0 %v678
        %v1234 = vpop.f32.mrb[0].mxu0
        %v1235 = vadd.f32 0.0, %v1234
        %v1236 = vpop.f32.mrb[0].mxu0
        %1237 = vdwg.mxu0
        %v1239 = vsel %vm680, %v1160, 0
        %1241 = vmatprep.subr.mxu0 0.0
        %1242 = vmatpush1.msra.mxu0 %v1239
        %1243 = vmatprep.subr.mxu0 0.0
        %1244 = vmatpush1.msra.mxu0 0.0
        %1245 = vmatprep.subr.mxu0 0.0
        %1246 = vmatpush1.msra.mxu0 0.0
        %1247 = vmatprep.subr.mxu0 0.0
        %1248 = vmatpush1.msra.mxu0 0.0
        %1249 = vmatprep.subr.mxu0 0.0
        %1250 = vmatpush1.msra.mxu0 0.0
        %1251 = vmatprep.subr.mxu0 0.0
        %1252 = vmatpush1.msra.mxu0 0.0
        %1253 = vmatprep.subr.mxu0 0.0
        %1254 = vmatpush1.msra.mxu0 0.0
        %1255 = vmatprep.subr.mxu0 0.0
        %1256 = vmatpush1.msra.mxu0 0.0
        %1257 = vmatprep.subr.mxu0 0.0
        %1258 = vmatpush1.msra.mxu0 0.0
        %1259 = vmatprep.subr.mxu0 0.0
        %1260 = vmatpush1.msra.mxu0 0.0
        %1261 = vmatprep.subr.mxu0 0.0
        %1262 = vmatpush1.msra.mxu0 0.0
        %1263 = vmatprep.subr.mxu0 0.0
        %1264 = vmatpush1.msra.mxu0 0.0
        %1265 = vmatprep.subr.mxu0 0.0
        %1266 = vmatpush1.msra.mxu0 0.0
        %1267 = vmatprep.subr.mxu0 0.0
        %1268 = vmatpush1.msra.mxu0 0.0
        %1269 = vmatprep.subr.mxu0 0.0
        %1270 = vmatpush1.msra.mxu0 0.0
        %1271 = vmatprep.subr.mxu0 0.0
        %1272 = vmatpush1.msra.mxu0 0.0
        %1273 = vmatprep.subr.mxu0 0.0
        %1274 = vmatpush1.msra.mxu0 0.0
        %1275 = vmatprep.subr.mxu0 0.0
        %1276 = vmatpush1.msra.mxu0 0.0
        %1277 = vmatprep.subr.mxu0 0.0
        %1278 = vmatpush1.msra.mxu0 0.0
        %1279 = vmatprep.subr.mxu0 0.0
        %1280 = vmatpush1.msra.mxu0 0.0
        %1281 = vmatprep.subr.mxu0 0.0
        %1282 = vmatpush1.msra.mxu0 0.0
        %1283 = vmatprep.subr.mxu0 0.0
        %1284 = vmatpush1.msra.mxu0 0.0
        %1285 = vmatprep.subr.mxu0 0.0
        %1286 = vmatpush1.msra.mxu0 0.0
        %1287 = vmatprep.subr.mxu0 0.0
        %1288 = vmatpush1.msra.mxu0 0.0
        %1289 = vmatprep.subr.mxu0 0.0
        %1290 = vmatpush1.msra.mxu0 0.0
        %1291 = vmatprep.subr.mxu0 0.0
        %1292 = vmatpush1.msra.mxu0 0.0
        %1293 = vmatprep.subr.mxu0 0.0
        %1294 = vmatpush1.msra.mxu0 0.0
        %1295 = vmatprep.subr.mxu0 0.0
        %1296 = vmatpush1.msra.mxu0 0.0
        %1297 = vmatprep.subr.mxu0 0.0
        %1298 = vmatpush1.msra.mxu0 0.0
        %1299 = vmatprep.subr.mxu0 0.0
        %1300 = vmatpush1.msra.mxu0 0.0
        %1301 = vmatprep.subr.mxu0 0.0
        %1302 = vmatpush1.msra.mxu0 0.0
        %1303 = vmatprep.subr.mxu0 0.0
        %1304 = vmatpush1.msra.mxu0 0.0
        %1305 = vmatprep.mubr.f32.mxu0 0.0
        %1306 = vmatmul.mubr.f32.gmra.mrb[0].mxu0 %v756
        %v1307 = vpop.f32.mrb[0].mxu0
        %v1308 = vadd.f32 0.0, %v1307
        %v1309 = vpop.f32.mrb[0].mxu0
        %1310 = vdwg.mxu0
        %v1311 = vmul.f32 %v1235, %v834
        %v1312 = vadd.f32 %v1311, %v1308
        %v1313 = vadd.f32 %v1312, %v841
        %v1314 = vmax.f32 %v1313, 0.0
        %v1315 = vmax.f32 %v1158, %v1314
        %1316 = vst [vmem:[%s274] sm:$0xff] %v1315
      $region48: #{bottleneck_forward.1} parent=35 // pred_fallthru
        _
      %s1317 = smul.u32 %s22, %s21
      %p1318 = scmp.lt.s32.totalorder %s20, 0
      %s1319 = scalar_select %p1318, %s20, 0
      %p1320 = scmp.lt.s32.totalorder %s1317, 0
      %s1321 = scalar_select %p1320, %s1317, 0
      %s1322 = sadd.s32 %s1321, %s1319
      %s1323 = smul.addr %s1322, 8
      %s1324 = scalar_lea.vmem %s4, %s1323
      // Predicated region
      $region49: #{bottleneck_forward.1} parent=35 // pred_check
        %p1325 = pneg %p160
      $region50: #{bottleneck_forward.1} parent=35 // pred_check_branch
        %1327 = sbr.rel (%p1325) target = $region52
      $region51: #{bottleneck_forward.1} parent=35 // pred_region
        %s1328 = smul.u32 %s22, %s21
      $region52: #{bottleneck_forward.1} parent=35 // pred_fallthru
        _
    $region36: #{bottleneck_forward.1} parent=5 // pred_fallthru
      _
    %p1329 = scmp.le.s32.totalorder 2, %s10
    // Predicated region
    $region53: #{bottleneck_forward.1} parent=5 // pred_check
      %p1330 = pneg %p1329
    $region54: #{bottleneck_forward.1} parent=5 // pred_check_branch
      %1332 = sbr.rel (%p1330) target = $region56
    $region55: #{bottleneck_forward.1} parent=5 // pred_region
      %s1333 = ssub.s32 %s10, 2
      // Predicated region
      $region57: #{bottleneck_forward.1} parent=55 // pred_check
        %p1334 = pneg %p166
      $region58: #{bottleneck_forward.1} parent=55 // pred_check_branch
        %1336 = sbr.rel (%p1334) target = $region60
      $region59: #{bottleneck_forward.1} parent=55 // pred_region
        %s1337 = smul.u32 %s25, %s24
        %p1338 = scmp.lt.s32.totalorder %s23, 0
        %s1339 = scalar_select %p1338, %s23, 0
        %p1340 = scmp.lt.s32.totalorder %s1337, 0
        %s1341 = scalar_select %p1340, %s1337, 0
        %s1342 = sadd.s32 %s1341, %s1339
        %s1343 = smul.addr %s1342, 8
        %s1344 = scalar_lea.vmem %s4, %s1343
      $region60: #{bottleneck_forward.1} parent=55 // pred_fallthru
        _
    $region56: #{bottleneck_forward.1} parent=5 // pred_fallthru
      _
  $region6: #{bottleneck_forward.1} parent=0 // loop_footer
    %s14 = sadd.s32 1, %s10
  $region7: #{bottleneck_forward.1} parent=0 // loop_footer_branch
    %9 = sbr.rel target = $region3
  $region8: #{bottleneck_forward.1} parent=0 // loop_exit
    _

</llo_original>
